<compile_context>
chip_gen: v5e
topology: v5e:2x2
jax: 0.10.0
libtpu: 0.0.40
codegen_flags: <defaults>
</compile_context>

<pallas_src>
import math
from functools import lru_cache, partial

import numpy as np
import jax
import jax.numpy as jnp
from jax.experimental import pallas as pl
from jax.experimental.pallas import tpu as pltpu


_WINDOW_SIZE = 11
_SIGMA = 1.5
_NUM_STATS = 5          # pred, gt, pred^2, gt^2, pred*gt


def _gaussian_1d(window_size=_WINDOW_SIZE, sigma=_SIGMA):
    """Normalized 1-D gaussian, f32 (matches torch create_window)."""
    half = window_size // 2
    g = np.array(
        [math.exp(-((x - half) ** 2) / (2.0 * sigma ** 2)) for x in range(window_size)],
        dtype=np.float32,
    )
    return g / g.sum()


def _band_toeplitz_np(n, g):
    """(n, n) banded matrix T with T[i, j] = g[j - i + half].

    (T @ x)[i, :] == sum_k g[k] * x_zeropad[i + k - half, :]  (zero-padded 1-D conv).
    The lane-direction conv is x @ T(n).T.
    """
    half = len(g) // 2
    idx = np.arange(n)
    diff = idx[None, :] - idx[:, None] + half            # (n, n)
    valid = (diff >= 0) & (diff < len(g))
    return np.where(valid, g[np.clip(diff, 0, len(g) - 1)], 0.0).astype(np.float32)


@lru_cache(maxsize=8)
def _band_matrices(H, W):
    """bf16 banded-Toeplitz conv matrices, built once per (H, W)."""
    g = _gaussian_1d()
    a_h = jnp.asarray(_band_toeplitz_np(H, g), dtype=jnp.bfloat16)    # left-mult: conv along H
    b_w = jnp.asarray(_band_toeplitz_np(W, g).T, dtype=jnp.bfloat16)  # right-mult: conv along W
    return a_h, b_w


# ---------------------------------------------------------------------------
# Fused per-channel kernel: compositing + masked L1 + mask sum + SSIM
# (separable gaussian conv as two batched bf16 MXU matmuls)
# ---------------------------------------------------------------------------
def make_fused_loss_kernel(H, W, bg_color, compute_l1_bg):
    C1 = 0.01 ** 2
    C2 = 0.03 ** 2
    conv_dtype = jnp.bfloat16   # TODO(synk): validate SSIM drift vs f32 before shipping

    def kernel(*refs):
        if compute_l1_bg:
            (gt_ref, pred_ref, mask_ref, jmask_ref, ah_ref, bw_ref,
             gt_out_ref, pred_out_ref, scal_ref) = refs
        else:
            (gt_ref, pred_ref, mask_ref, ah_ref, bw_ref,
             gt_out_ref, pred_out_ref, scal_ref) = refs

        c = pl.program_id(0)
        # static per-channel bg color, picked with a scalar select
        bgc = jnp.where(
            c == 0, jnp.float32(bg_color[0]),
            jnp.where(c == 1, jnp.float32(bg_color[1]), jnp.float32(bg_color[2])))

        mask = mask_ref[0]                       # (H, W) f32
        one_minus_mask = 1.0 - mask

        gt_c = gt_ref[0]                         # (H, W)
        pr_c = pred_ref[0]

        bg_term = bgc * one_minus_mask
        gt_comp = gt_c * mask + bg_term
        pr_comp = pr_c * mask + bg_term
        gt_out_ref[0] = gt_comp
        pred_out_ref[0] = pr_comp

        # masked L1: reduce immediately to a (1,1) partial (no full-map accumulator)
        l1_sum = jnp.sum(jnp.abs(pr_comp - gt_comp) * mask, axis=(0, 1), keepdims=True)

        if compute_l1_bg:
            jmask = jmask_ref[0]
            one_minus_jmask = 1.0 - jmask
            not_masked_pred = pr_c * one_minus_jmask + bgc * jmask
            l1bg_sum = jnp.sum(jnp.abs(not_masked_pred - bgc) * one_minus_jmask,
                               axis=(0, 1), keepdims=True)
        else:
            l1bg_sum = jnp.zeros((1, 1), jnp.float32)

        # ---- SSIM: the 5 gaussian convs for this channel batched into 2 matmuls ----
        stats = (pr_comp, gt_comp, pr_comp * pr_comp, gt_comp * gt_comp,
                 pr_comp * gt_comp)
        slab = jnp.concatenate([s.astype(conv_dtype) for s in stats], axis=1)  # (H, 5W) bf16
        # sublane-direction conv: A_H @ slab (band matrix read at the dot call site)
        t = jnp.dot(ah_ref[...], slab, preferred_element_type=jnp.float32)     # (H, 5W) f32
        # restack lane blocks into a sublane stack, then lane-direction conv: (.) @ B_W
        t_s = jnp.concatenate(
            [t[:, i * W:(i + 1) * W] for i in range(_NUM_STATS)],
            axis=0).astype(conv_dtype)                                         # (5H, W) bf16
        r = jnp.dot(t_s, bw_ref[...], preferred_element_type=jnp.float32)      # (5H, W) f32

        mu1 = r[0 * H:1 * H]
        mu2 = r[1 * H:2 * H]
        e_pp = r[2 * H:3 * H]
        e_gg = r[3 * H:4 * H]
        e_pg = r[4 * H:5 * H]

        mu1_sq = mu1 * mu1
        mu2_sq = mu2 * mu2
        mu1_mu2 = mu1 * mu2
        sigma1_sq = e_pp - mu1_sq
        sigma2_sq = e_gg - mu2_sq
        sigma12 = e_pg - mu1_mu2
        num = (2.0 * mu1_mu2 + C1) * (2.0 * sigma12 + C2)
        den = (mu1_sq + mu2_sq + C1) * (sigma1_sq + sigma2_sq + C2)
        ssim_sum = jnp.sum(num * pl.reciprocal(den, approx=True),
                           axis=(0, 1), keepdims=True)

        mask_sum = jnp.sum(mask, axis=(0, 1), keepdims=True)

        # pack the per-channel partial scalars into one lane-dense (1, 128) row:
        # lane 0: sum|diff|*mask, lane 1: l1_bg partial, lane 2: mask.sum(), lane 3: ssim partial
        lane = jax.lax.broadcasted_iota(jnp.int32, (1, 128), 1)
        scal_ref[0] = (jnp.where(lane == 0, l1_sum, 0.0)
                       + jnp.where(lane == 1, l1bg_sum, 0.0)
                       + jnp.where(lane == 2, mask_sum, 0.0)
                       + jnp.where(lane == 3, ssim_sum, 0.0))

    return kernel


def _fused_loss_pallas(gt_image, pred_img, mask, joint_mask, bg_color, compute_l1_bg):
    C, H, W = gt_image.shape
    a_h, b_w = _band_matrices(H, W)

    chan_spec = pl.BlockSpec((1, H, W), lambda c: (c, 0, 0))
    shared_spec = pl.BlockSpec((1, H, W), lambda c: (0, 0, 0))
    ah_spec = pl.BlockSpec((H, H), lambda c: (0, 0))
    bw_spec = pl.BlockSpec((W, W), lambda c: (0, 0))

    in_specs = [chan_spec, chan_spec, shared_spec]
    args = [gt_image, pred_img, mask]
    if compute_l1_bg:
        in_specs.append(shared_spec)
        args.append(joint_mask)
    in_specs += [ah_spec, bw_spec]
    args += [a_h, b_w]

    gt_comp, pred_comp, scal = pl.pallas_call(
        make_fused_loss_kernel(H, W, bg_color, compute_l1_bg),
        grid=(C,),
        out_shape=(
            jax.ShapeDtypeStruct((C, H, W), jnp.float32),    # composited gt  (extras)
            jax.ShapeDtypeStruct((C, H, W), jnp.float32),    # composited pred (extras)
            jax.ShapeDtypeStruct((C, 1, 128), jnp.float32),  # per-channel packed partials
        ),
        in_specs=in_specs,
        out_specs=(
            pl.BlockSpec((1, H, W), lambda c: (c, 0, 0)),
            pl.BlockSpec((1, H, W), lambda c: (c, 0, 0)),
            pl.BlockSpec((1, 1, 128), lambda c: (c, 0, 0)),
        ),
        compiler_params=pltpu.CompilerParams(
            dimension_semantics=("parallel",)),   # channel split -> both v7x TensorCores
    )(*args)
    return gt_comp, pred_comp, scal


# ---------------------------------------------------------------------------
# Wrapper: single pallas_call + fused weighted-sum epilogue (matches forward())
# ---------------------------------------------------------------------------
@partial(jax.jit, static_argnames=("human_bg_color", "l_l1_w", "l_l1_bg_w", "l_ssim_w"))
def hand_object_loss_forward(gt_image, pred_img, mask, joint_mask=None,
                             human_bg_color=(1.0, 1.0, 1.0),
                             l_l1_w=0.8, l_l1_bg_w=0.0, l_ssim_w=0.2):
    C, H, W = gt_image.shape
    assert C == 3
    compute_l1 = l_l1_w > 0.0
    compute_l1_bg = compute_l1 and (l_l1_bg_w != 0.0)
    if compute_l1_bg and joint_mask is None:
        raise ValueError("joint_mask is required when l_l1_bg_w != 0")

    gt_comp, pred_comp, scal = _fused_loss_pallas(
        gt_image, pred_img, mask, joint_mask, human_bg_color, compute_l1_bg)

    scal = scal[:, 0, :]                   # (3, 128)
    inv_n = 1.0 / float(C * H * W)
    Ll1 = jnp.sum(scal[:, 0]) * inv_n
    Ll1_bg = jnp.sum(scal[:, 1]) * inv_n
    mask_sum = scal[0, 2]
    ssim_val = jnp.sum(scal[:, 3]) * inv_n

    loss_dict = {}
    if compute_l1:
        loss_dict["l1"] = l_l1_w * Ll1
        loss_dict["l1_bg"] = l_l1_bg_w * Ll1_bg
    if l_ssim_w > 0.0:
        loss_ssim = (1.0 - ssim_val) * (mask_sum / float(W * H))
        loss_dict["ssim"] = l_ssim_w * loss_ssim

    # TODO(synk): joint_train=True branches (transl/j3d/rot/pose/l2_smt regs), the
    # sds_items branches, and the LPIPS(VGG)+PatchSampler / lbs branches (weights 0
    # by default) are not exercised here.
    extras_dict = {"gt_img": gt_comp, "pred_img": pred_comp}

    loss = 0.0
    for _, v in loss_dict.items():
        loss = loss + v
    return loss, loss_dict, extras_dict


if __name__ == "__main__":
    key = jax.random.PRNGKey(0)
    k1, k2, k3, k4 = jax.random.split(key, 4)
    H = W = 128    # lane-dense (W multiple of 128), sublane-aligned

    gt_image = jax.random.uniform(k1, (3, H, W), jnp.float32)        # data['rgb']
    pred_img = jax.random.uniform(k2, (3, H, W), jnp.float32)        # render_pkg['render']
    mask_right = (jax.random.uniform(k3, (H, W)) > 0.5).astype(jnp.float32)
    mask_left = (jax.random.uniform(k4, (H, W)) > 0.5).astype(jnp.float32)

    mask = mask_right[None]                       # data['mask']['right'].unsqueeze(0)
    joint_mask = (mask_right + mask_left)[None]   # sum(data['mask'].values()).unsqueeze(0)

    loss, loss_dict, extras = hand_object_loss_forward(
        gt_image, pred_img, mask, joint_mask)
    jax.block_until_ready(loss)
    print("KERNEL_OK")
</pallas_src>

<mosaic_0001>
module attributes {stable_mosaic.version = 11 : i64} {
  func.func @kernel(%arg0: i32, %arg1: memref<1x128x128xf32, #tpu.memory_space<vmem>>, %arg2: memref<1x128x128xf32, #tpu.memory_space<vmem>>, %arg3: memref<1x128x128xf32, #tpu.memory_space<vmem>>, %arg4: memref<128x128xbf16, #tpu.memory_space<vmem>>, %arg5: memref<128x128xbf16, #tpu.memory_space<vmem>>, %arg6: memref<1x128x128xf32, #tpu.memory_space<vmem>>, %arg7: memref<1x128x128xf32, #tpu.memory_space<vmem>>, %arg8: memref<1x1x128xf32, #tpu.memory_space<vmem>>) attributes {dimension_semantics = [#tpu.dimension_semantics<parallel>], iteration_bounds = array<i64: 3>, scalar_prefetch = 0 : i64, scratch_operands = 0 : i64, tpu.core_type = #tpu.core_type<tc>, window_params = [{transform_indices = @transform_0, window_bounds = array<i64: 1, 128, 128>}, {transform_indices = @transform_1, window_bounds = array<i64: 1, 128, 128>}, {pipeline_mode = #tpu.pipeline_mode<synchronous>, transform_indices = @transform_2, window_bounds = array<i64: 1, 128, 128>}, {pipeline_mode = #tpu.pipeline_mode<synchronous>, transform_indices = @transform_3, window_bounds = array<i64: 128, 128>}, {pipeline_mode = #tpu.pipeline_mode<synchronous>, transform_indices = @transform_4, window_bounds = array<i64: 128, 128>}, {transform_indices = @transform_5, window_bounds = array<i64: 1, 128, 128>}, {transform_indices = @transform_6, window_bounds = array<i64: 1, 128, 128>}, {transform_indices = @transform_7, window_bounds = array<i64: 1, 1, 128>}]} {
    %c0_i32 = arith.constant 0 : i32
    %0 = arith.cmpi eq, %arg0, %c0_i32 : i32
    %c1_i32 = arith.constant 1 : i32
    %1 = arith.cmpi eq, %arg0, %c1_i32 : i32
    %cst = arith.constant 1.000000e+00 : f32
    %cst_0 = arith.constant 1.000000e+00 : f32
    %2 = arith.select %1, %cst, %cst_0 : f32
    %cst_1 = arith.constant 1.000000e+00 : f32
    %3 = arith.select %0, %cst_1, %2 : f32
    %c0 = arith.constant 0 : index
    %c0_2 = arith.constant 0 : index
    %c0_3 = arith.constant 0 : index
    %4 = vector.load %arg3[%c0, %c0_2, %c0_3] : memref<1x128x128xf32, #tpu.memory_space<vmem>>, vector<1x128x128xf32>
    %5 = vector.shape_cast %4 : vector<1x128x128xf32> to vector<128x128xf32>
    %cst_4 = arith.constant 1.000000e+00 : f32
    %6 = vector.broadcast %cst_4 : f32 to vector<128x128xf32>
    %7 = arith.subf %6, %5 : vector<128x128xf32>
    %c0_5 = arith.constant 0 : index
    %c0_6 = arith.constant 0 : index
    %c0_7 = arith.constant 0 : index
    %8 = vector.load %arg1[%c0_5, %c0_6, %c0_7] : memref<1x128x128xf32, #tpu.memory_space<vmem>>, vector<1x128x128xf32>
    %9 = vector.shape_cast %8 : vector<1x128x128xf32> to vector<128x128xf32>
    %c0_8 = arith.constant 0 : index
    %c0_9 = arith.constant 0 : index
    %c0_10 = arith.constant 0 : index
    %10 = vector.load %arg2[%c0_8, %c0_9, %c0_10] : memref<1x128x128xf32, #tpu.memory_space<vmem>>, vector<1x128x128xf32>
    %11 = vector.shape_cast %10 : vector<1x128x128xf32> to vector<128x128xf32>
    %12 = vector.broadcast %3 : f32 to vector<128x128xf32>
    %13 = arith.mulf %12, %7 : vector<128x128xf32>
    %14 = arith.mulf %9, %5 : vector<128x128xf32>
    %15 = arith.addf %14, %13 : vector<128x128xf32>
    %16 = arith.mulf %11, %5 : vector<128x128xf32>
    %17 = arith.addf %16, %13 : vector<128x128xf32>
    %c0_11 = arith.constant 0 : index
    %c0_12 = arith.constant 0 : index
    %c0_13 = arith.constant 0 : index
    %18 = vector.load %arg6[%c0_11, %c0_12, %c0_13] : memref<1x128x128xf32, #tpu.memory_space<vmem>>, vector<1x128x128xf32>
    %19 = vector.shape_cast %18 : vector<1x128x128xf32> to vector<128x128xf32>
    %20 = vector.shape_cast %15 : vector<128x128xf32> to vector<1x128x128xf32>
    tpu.vector_store %arg6[%c0_11, %c0_12, %c0_13], %20 {strides = array<i32>} : memref<1x128x128xf32, #tpu.memory_space<vmem>>, vector<1x128x128xf32>,
    %c0_14 = arith.constant 0 : index
    %c0_15 = arith.constant 0 : index
    %c0_16 = arith.constant 0 : index
    %21 = vector.load %arg7[%c0_14, %c0_15, %c0_16] : memref<1x128x128xf32, #tpu.memory_space<vmem>>, vector<1x128x128xf32>
    %22 = vector.shape_cast %21 : vector<1x128x128xf32> to vector<128x128xf32>
    %23 = vector.shape_cast %17 : vector<128x128xf32> to vector<1x128x128xf32>
    tpu.vector_store %arg7[%c0_14, %c0_15, %c0_16], %23 {strides = array<i32>} : memref<1x128x128xf32, #tpu.memory_space<vmem>>, vector<1x128x128xf32>,
    %24 = arith.subf %17, %15 : vector<128x128xf32>
    %25 = math.absf %24 : vector<128x128xf32>
    %26 = arith.mulf %25, %5 : vector<128x128xf32>
    %27 = vector.shape_cast %26 : vector<128x128xf32> to vector<1x128x128xf32>
    %cst_17 = arith.constant dense<0.000000e+00> : vector<1xf32>
    %28 = vector.multi_reduction <add>, %27, %cst_17 [1, 2] : vector<1x128x128xf32> to vector<1xf32>
    %29 = vector.shape_cast %28 : vector<1xf32> to vector<1x1x1xf32>
    %30 = vector.extract %29[0, 0, 0] : f32 from vector<1x1x1xf32>
    %31 = vector.broadcast %30 : f32 to vector<1x1xf32>
    %cst_18 = arith.constant 0.000000e+00 : f32
    %32 = vector.broadcast %cst_18 : f32 to vector<1x1xf32>
    %33 = arith.mulf %17, %17 : vector<128x128xf32>
    %34 = arith.mulf %15, %15 : vector<128x128xf32>
    %35 = arith.mulf %17, %15 : vector<128x128xf32>
    %36 = arith.truncf %17 : vector<128x128xf32> to vector<128x128xbf16>
    %37 = arith.truncf %15 : vector<128x128xf32> to vector<128x128xbf16>
    %38 = arith.truncf %33 : vector<128x128xf32> to vector<128x128xbf16>
    %39 = arith.truncf %34 : vector<128x128xf32> to vector<128x128xbf16>
    %40 = arith.truncf %35 : vector<128x128xf32> to vector<128x128xbf16>
    %41 = tpu.concatenate %36, %37, %38, %39, %40 in 1 : vector<128x128xbf16>, vector<128x128xbf16>, vector<128x128xbf16>, vector<128x128xbf16>, vector<128x128xbf16> -> vector<128x640xbf16>
    %c0_19 = arith.constant 0 : index
    %c0_20 = arith.constant 0 : index
    %42 = vector.load %arg4[%c0_19, %c0_20] : memref<128x128xbf16, #tpu.memory_space<vmem>>, vector<128x128xbf16>
    %cst_21 = arith.constant dense<0.000000e+00> : vector<128x640xf32>
    %43 = tpu.matmul %42, %41, %cst_21 {dimension_numbers = #tpu.dot_dimension_numbers<[1], [0], [0], [1], [0, 0, 1, 1], [], []>} : vector<128x128xbf16>, vector<128x640xbf16>, vector<128x640xf32> -> vector<128x640xf32>
    %44 = vector.extract_strided_slice %43 {offsets = [0, 0], sizes = [128, 128], strides = [1, 1]} : vector<128x640xf32> to vector<128x128xf32>
    %45 = vector.extract_strided_slice %43 {offsets = [0, 128], sizes = [128, 128], strides = [1, 1]} : vector<128x640xf32> to vector<128x128xf32>
    %46 = vector.extract_strided_slice %43 {offsets = [0, 256], sizes = [128, 128], strides = [1, 1]} : vector<128x640xf32> to vector<128x128xf32>
    %47 = vector.extract_strided_slice %43 {offsets = [0, 384], sizes = [128, 128], strides = [1, 1]} : vector<128x640xf32> to vector<128x128xf32>
    %48 = vector.extract_strided_slice %43 {offsets = [0, 512], sizes = [128, 128], strides = [1, 1]} : vector<128x640xf32> to vector<128x128xf32>
    %49 = tpu.concatenate %44, %45, %46, %47, %48 in 0 : vector<128x128xf32>, vector<128x128xf32>, vector<128x128xf32>, vector<128x128xf32>, vector<128x128xf32> -> vector<640x128xf32>
    %50 = arith.truncf %49 : vector<640x128xf32> to vector<640x128xbf16>
    %c0_22 = arith.constant 0 : index
    %c0_23 = arith.constant 0 : index
    %51 = vector.load %arg5[%c0_22, %c0_23] : memref<128x128xbf16, #tpu.memory_space<vmem>>, vector<128x128xbf16>
    %cst_24 = arith.constant dense<0.000000e+00> : vector<640x128xf32>
    %52 = tpu.matmul %50, %51, %cst_24 {dimension_numbers = #tpu.dot_dimension_numbers<[1], [0], [0], [1], [0, 0, 1, 1], [], []>} : vector<640x128xbf16>, vector<128x128xbf16>, vector<640x128xf32> -> vector<640x128xf32>
    %53 = vector.extract_strided_slice %52 {offsets = [0, 0], sizes = [128, 128], strides = [1, 1]} : vector<640x128xf32> to vector<128x128xf32>
    %54 = vector.extract_strided_slice %52 {offsets = [128, 0], sizes = [128, 128], strides = [1, 1]} : vector<640x128xf32> to vector<128x128xf32>
    %55 = vector.extract_strided_slice %52 {offsets = [256, 0], sizes = [128, 128], strides = [1, 1]} : vector<640x128xf32> to vector<128x128xf32>
    %56 = vector.extract_strided_slice %52 {offsets = [384, 0], sizes = [128, 128], strides = [1, 1]} : vector<640x128xf32> to vector<128x128xf32>
    %57 = vector.extract_strided_slice %52 {offsets = [512, 0], sizes = [128, 128], strides = [1, 1]} : vector<640x128xf32> to vector<128x128xf32>
    %58 = arith.mulf %53, %53 : vector<128x128xf32>
    %59 = arith.mulf %54, %54 : vector<128x128xf32>
    %60 = arith.mulf %53, %54 : vector<128x128xf32>
    %61 = arith.subf %55, %58 : vector<128x128xf32>
    %62 = arith.subf %56, %59 : vector<128x128xf32>
    %63 = arith.subf %57, %60 : vector<128x128xf32>
    %cst_25 = arith.constant 2.000000e+00 : f32
    %64 = vector.broadcast %cst_25 : f32 to vector<128x128xf32>
    %65 = arith.mulf %64, %60 : vector<128x128xf32>
    %cst_26 = arith.constant 9.99999974E-5 : f32
    %66 = vector.broadcast %cst_26 : f32 to vector<128x128xf32>
    %67 = arith.addf %65, %66 : vector<128x128xf32>
    %cst_27 = arith.constant 2.000000e+00 : f32
    %68 = vector.broadcast %cst_27 : f32 to vector<128x128xf32>
    %69 = arith.mulf %68, %63 : vector<128x128xf32>
    %cst_28 = arith.constant 8.99999984E-4 : f32
    %70 = vector.broadcast %cst_28 : f32 to vector<128x128xf32>
    %71 = arith.addf %69, %70 : vector<128x128xf32>
    %72 = arith.mulf %67, %71 : vector<128x128xf32>
    %73 = arith.addf %58, %59 : vector<128x128xf32>
    %cst_29 = arith.constant 9.99999974E-5 : f32
    %74 = vector.broadcast %cst_29 : f32 to vector<128x128xf32>
    %75 = arith.addf %73, %74 : vector<128x128xf32>
    %76 = arith.addf %61, %62 : vector<128x128xf32>
    %cst_30 = arith.constant 8.99999984E-4 : f32
    %77 = vector.broadcast %cst_30 : f32 to vector<128x128xf32>
    %78 = arith.addf %76, %77 : vector<128x128xf32>
    %79 = arith.mulf %75, %78 : vector<128x128xf32>
    %80 = tpu.reciprocal %79 {approx = true} : vector<128x128xf32> -> vector<128x128xf32>
    %81 = arith.mulf %72, %80 : vector<128x128xf32>
    %82 = vector.shape_cast %81 : vector<128x128xf32> to vector<1x128x128xf32>
    %cst_31 = arith.constant dense<0.000000e+00> : vector<1xf32>
    %83 = vector.multi_reduction <add>, %82, %cst_31 [1, 2] : vector<1x128x128xf32> to vector<1xf32>
    %84 = vector.shape_cast %83 : vector<1xf32> to vector<1x1x1xf32>
    %85 = vector.extract %84[0, 0, 0] : f32 from vector<1x1x1xf32>
    %86 = vector.broadcast %85 : f32 to vector<1x1xf32>
    %87 = vector.shape_cast %5 : vector<128x128xf32> to vector<1x128x128xf32>
    %cst_32 = arith.constant dense<0.000000e+00> : vector<1xf32>
    %88 = vector.multi_reduction <add>, %87, %cst_32 [1, 2] : vector<1x128x128xf32> to vector<1xf32>
    %89 = vector.shape_cast %88 : vector<1xf32> to vector<1x1x1xf32>
    %90 = vector.extract %89[0, 0, 0] : f32 from vector<1x1x1xf32>
    %91 = vector.broadcast %90 : f32 to vector<1x1xf32>
    %92 = tpu.iota {dimensions = array<i32: 1>} : vector<1x128xi32>
    %c0_i32_33 = arith.constant 0 : i32
    %93 = vector.broadcast %c0_i32_33 : i32 to vector<1x128xi32>
    %94 = arith.cmpi eq, %92, %93 : vector<1x128xi32>
    %cst_34 = arith.constant 0.000000e+00 : f32
    %95 = vector.shape_cast %31 : vector<1x1xf32> to vector<1x1xf32>
    %96 = vector.broadcast %95 : vector<1x1xf32> to vector<1x128xf32>
    %97 = vector.broadcast %cst_34 : f32 to vector<1x128xf32>
    %98 = arith.select %94, %96, %97 : vector<1x128xi1>, vector<1x128xf32>
    %c1_i32_35 = arith.constant 1 : i32
    %99 = vector.broadcast %c1_i32_35 : i32 to vector<1x128xi32>
    %100 = arith.cmpi eq, %92, %99 : vector<1x128xi32>
    %cst_36 = arith.constant 0.000000e+00 : f32
    %101 = vector.shape_cast %32 : vector<1x1xf32> to vector<1x1xf32>
    %102 = vector.broadcast %101 : vector<1x1xf32> to vector<1x128xf32>
    %103 = vector.broadcast %cst_36 : f32 to vector<1x128xf32>
    %104 = arith.select %100, %102, %103 : vector<1x128xi1>, vector<1x128xf32>
    %105 = arith.addf %98, %104 : vector<1x128xf32>
    %c2_i32 = arith.constant 2 : i32
    %106 = vector.broadcast %c2_i32 : i32 to vector<1x128xi32>
    %107 = arith.cmpi eq, %92, %106 : vector<1x128xi32>
    %cst_37 = arith.constant 0.000000e+00 : f32
    %108 = vector.shape_cast %91 : vector<1x1xf32> to vector<1x1xf32>
    %109 = vector.broadcast %108 : vector<1x1xf32> to vector<1x128xf32>
    %110 = vector.broadcast %cst_37 : f32 to vector<1x128xf32>
    %111 = arith.select %107, %109, %110 : vector<1x128xi1>, vector<1x128xf32>
    %112 = arith.addf %105, %111 : vector<1x128xf32>
    %c3_i32 = arith.constant 3 : i32
    %113 = vector.broadcast %c3_i32 : i32 to vector<1x128xi32>
    %114 = arith.cmpi eq, %92, %113 : vector<1x128xi32>
    %cst_38 = arith.constant 0.000000e+00 : f32
    %115 = vector.shape_cast %86 : vector<1x1xf32> to vector<1x1xf32>
    %116 = vector.broadcast %115 : vector<1x1xf32> to vector<1x128xf32>
    %117 = vector.broadcast %cst_38 : f32 to vector<1x128xf32>
    %118 = arith.select %114, %116, %117 : vector<1x128xi1>, vector<1x128xf32>
    %119 = arith.addf %112, %118 : vector<1x128xf32>
    %c0_39 = arith.constant 0 : index
    %c0_40 = arith.constant 0 : index
    %c0_41 = arith.constant 0 : index
    %120 = vector.load %arg8[%c0_39, %c0_40, %c0_41] : memref<1x1x128xf32, #tpu.memory_space<vmem>>, vector<1x1x128xf32>
    %121 = vector.shape_cast %120 : vector<1x1x128xf32> to vector<1x128xf32>
    %122 = vector.shape_cast %119 : vector<1x128xf32> to vector<1x1x128xf32>
    tpu.vector_store %arg8[%c0_39, %c0_40, %c0_41], %122 {strides = array<i32>} : memref<1x1x128xf32, #tpu.memory_space<vmem>>, vector<1x1x128xf32>,
    return
  }
  func.func @transform_0(%arg0: i32) -> (i32, i32, i32) {
    %c0_i32 = arith.constant 0 : i32
    %c0_i32_0 = arith.constant 0 : i32
    %c0_i32_1 = arith.constant 0 : i32
    return %arg0, %c0_i32, %c0_i32_0 : i32, i32, i32
  }
  func.func @transform_1(%arg0: i32) -> (i32, i32, i32) {
    %c0_i32 = arith.constant 0 : i32
    %c0_i32_0 = arith.constant 0 : i32
    %c0_i32_1 = arith.constant 0 : i32
    return %arg0, %c0_i32, %c0_i32_0 : i32, i32, i32
  }
  func.func @transform_2(%arg0: i32) -> (i32, i32, i32) {
    %c0_i32 = arith.constant 0 : i32
    %c0_i32_0 = arith.constant 0 : i32
    %c0_i32_1 = arith.constant 0 : i32
    %c0_i32_2 = arith.constant 0 : i32
    return %c0_i32, %c0_i32_0, %c0_i32_1 : i32, i32, i32
  }
  func.func @transform_3(%arg0: i32) -> (i32, i32) {
    %c0_i32 = arith.constant 0 : i32
    %c0_i32_0 = arith.constant 0 : i32
    %c0_i32_1 = arith.constant 0 : i32
    return %c0_i32, %c0_i32_0 : i32, i32
  }
  func.func @transform_4(%arg0: i32) -> (i32, i32) {
    %c0_i32 = arith.constant 0 : i32
    %c0_i32_0 = arith.constant 0 : i32
    %c0_i32_1 = arith.constant 0 : i32
    return %c0_i32, %c0_i32_0 : i32, i32
  }
  func.func @transform_5(%arg0: i32) -> (i32, i32, i32) {
    %c0_i32 = arith.constant 0 : i32
    %c0_i32_0 = arith.constant 0 : i32
    %c0_i32_1 = arith.constant 0 : i32
    return %arg0, %c0_i32, %c0_i32_0 : i32, i32, i32
  }
  func.func @transform_6(%arg0: i32) -> (i32, i32, i32) {
    %c0_i32 = arith.constant 0 : i32
    %c0_i32_0 = arith.constant 0 : i32
    %c0_i32_1 = arith.constant 0 : i32
    return %arg0, %c0_i32, %c0_i32_0 : i32, i32, i32
  }
  func.func @transform_7(%arg0: i32) -> (i32, i32, i32) {
    %c0_i32 = arith.constant 0 : i32
    %c0_i32_0 = arith.constant 0 : i32
    %c0_i32_1 = arith.constant 0 : i32
    return %arg0, %c0_i32, %c0_i32_0 : i32, i32, i32
  }
}

</mosaic_0001>

<llo_original>
// kernel: hand_object_loss_forward.1
$region0: #{hand_object_loss_forward.1}
  #allocation0 [shape = 'u32[]', space=smem, size = 0x4, offset = 0x4, fixed_abs, tag = 'smem constant byte address 0x4 - core index']
  #allocation1 [shape = 'u32[72,128]{1,0:T(1,128)}', space=vmem, size = 0x9000, scoped, tag = 'internal scratch']
  %s0 = inlined_call_operand.hbm [shape: f32[3,128,128], index: 0, kind: input, shape index: {}]
  %s1 = inlined_call_operand.hbm [shape: f32[3,128,128], index: 1, kind: input, shape index: {}]
  %s2 = inlined_call_operand.hbm [shape: f32[1,128,128], index: 2, kind: input, shape index: {}]
  %s3 = inlined_call_operand.hbm [shape: bf16[128,128], index: 3, kind: input, shape index: {}, may-alias: {3,4}]
  %s4 = inlined_call_operand.hbm [shape: bf16[128,128], index: 4, kind: input, shape index: {}, may-alias: {3,4}]
  %s5 = inlined_call_operand.hbm [shape: f32[3,128,128], index: 5, kind: output, shape index: {0}]
  %s6 = inlined_call_operand.hbm [shape: f32[3,128,128], index: 6, kind: output, shape index: {1}]
  %s7 = inlined_call_operand.vmem [shape: f32[3,1,128], index: 7, kind: output, shape index: {2}]
  %8 = xla_tuple %s5, %s6, %s7
  %s9 = sld [smem:[#allocation0]]
  $region89: #{hand_object_loss_forward.1} parent=0
    _
  %s11 = ssub.s32 1, %s9
  %s12 = scalar_select 0, %s11, %s9
  $region1: #{hand_object_loss_forward.1} parent=0
    #allocation2 [shape = 'u8[131072]{0}', space=vmem, size = 0x20000, scoped, tag = 'input window, operand 0']
    #allocation3 [shape = 's32[2]{0}', space=sflag, size = 0x8, scoped, tag = 'scoped memory for hand_object_loss_forward.1']
    #allocation4 [shape = 's32[2]{0}', space=sflag, size = 0x8, scoped, tag = 'scoped memory for hand_object_loss_forward.1']
    #allocation5 [shape = 'u8[131072]{0}', space=vmem, size = 0x20000, scoped, tag = 'input window, operand 1']
    #allocation6 [shape = 's32[2]{0}', space=sflag, size = 0x8, scoped, tag = 'scoped memory for hand_object_loss_forward.1']
    #allocation7 [shape = 'u8[65536]{0}', space=vmem, size = 0x10000, scoped, tag = 'input window, operand 2, single buffered']
    #allocation8 [shape = 'u8[32768]{0}', space=vmem, size = 0x8000, scoped, tag = 'input window, operand 3, single buffered']
    #allocation9 [shape = 's32[1]{0}', space=sflag, size = 0x4, scoped, tag = 'scoped memory for hand_object_loss_forward.1']
    #allocation10 [shape = 'u8[32768]{0}', space=vmem, size = 0x8000, scoped, tag = 'input window, operand 4, single buffered']
    #allocation11 [shape = 'u8[131072]{0}', space=vmem, size = 0x20000, scoped, tag = 'output window, operand 0']
    #allocation12 [shape = 'u8[131072]{0}', space=vmem, size = 0x20000, scoped, tag = 'output window, operand 1']
    #allocation13 [shape = 's32[2]{0}', space=sflag, size = 0x8, scoped, tag = 'scoped memory for hand_object_loss_forward.1']
    %13 = vsyncpa [#allocation3], 0
    %s14 = scalar_lea.sflag [#allocation3], 1
    %15 = vsyncpa %s14, 0
    %16 = vsyncpa [#allocation6], 0
    %s17 = scalar_lea.sflag [#allocation6], 1
    %18 = vsyncpa %s17, 0
    %19 = vsyncpa [#allocation9], 0
    %20 = vsyncpa [#allocation4], 0
    %s21 = scalar_lea.sflag [#allocation4], 1
    %22 = vsyncpa %s21, 0
    %23 = vsyncpa [#allocation13], 0
    %s24 = scalar_lea.sflag [#allocation13], 1
    %25 = vsyncpa %s24, 0
    loop: start=0, step=1, limit=5
    $region2: #{hand_object_loss_forward.1} parent=1 // loop_pre_header
      _
    $region3: #{hand_object_loss_forward.1} parent=1 // loop_header
      %s27 = sphi 0, %s31
      %p28 = scmp.ge.s32.totalorder %s27, 5
      %s37 = sphi 0, %s39
      %s40 = sphi 0, %s37
      %s41 = sphi 0, %s40
      %s57 = sphi 0, %s41
      %s63 = sphi 0, %s65
      %s66 = sphi 0, %s63
      %s67 = sphi 0, %s66
      %s83 = sphi 0, %s67
      %s87 = sphi 0, %s87
      %s89 = sphi 0, %s87
      %s90 = sphi 0, %s89
      %s104 = sphi 0, %s90
      %s108 = sphi 0, %s108
      %s110 = sphi 0, %s108
      %s111 = sphi 0, %s110
      %s125 = sphi 0, %s111
      %s129 = sphi 0, %s129
      %s131 = sphi 0, %s129
      %s132 = sphi 0, %s131
      %s146 = sphi 0, %s132
      %s152 = sphi 0, %s154
      %s155 = sphi 0, %s152
      %s156 = sphi 0, %s155
      %s172 = sphi 0, %s156
      %s178 = sphi 0, %s180
      %s181 = sphi 0, %s178
      %s182 = sphi 0, %s181
      %s198 = sphi 0, %s182
      %s204 = sphi 0, %s206
      %s207 = sphi 0, %s204
      %s208 = sphi 0, %s207
      %s224 = sphi 0, %s208
    $region4: #{hand_object_loss_forward.1} parent=1 // loop_header_branch
      %30 = sbr.rel (%p28) target = $region8
    $region5: #{hand_object_loss_forward.1} parent=1 // loop_body
      %s32 = ssub.s32 %s27, 1
      %s33 = ssub.s32 %s27, 2
      %s34 = sadd.s32 %s27, 1
      %s35 = ssub.s32 %s27, %s34
      %p36 = scmp.eq.s32.totalorder %s35, 0
      %s38 = sadd.s32 %s37, 1
      %s39 = scalar_select %p36, %s37, %s38
      %p42 = pneg %p36
      %p43 = scmp.eq.s32.totalorder %s27, 2
      %p44 = por %p42, %p43
      %p45 = scmp.ne.s32.totalorder %s37, %s40
      %p46 = scmp.eq.s32.totalorder %s27, 0
      %p47 = por %p45, %p46
      %p48 = scmp.ne.s32.totalorder %s37, %s40
      %p49 = scmp.eq.s32.totalorder %s32, 2
      %p50 = por %p48, %p49
      %p51 = scmp.ne.s32.totalorder %s40, %s41
      %p52 = scmp.eq.s32.totalorder %s32, 0
      %p53 = por %p51, %p52
      %p54 = scmp.ne.s32.totalorder %s40, %s41
      %p55 = scmp.eq.s32.totalorder %s33, 2
      %p56 = por %p54, %p55
      %p58 = scmp.ne.s32.totalorder %s41, %s57
      %p59 = scmp.eq.s32.totalorder %s33, 0
      %p60 = por %p58, %p59
      %s61 = ssub.s32 %s27, %s34
      %p62 = scmp.eq.s32.totalorder %s61, 0
      %s64 = sadd.s32 %s63, 1
      %s65 = scalar_select %p62, %s63, %s64
      %p68 = pneg %p62
      %p69 = scmp.eq.s32.totalorder %s27, 2
      %p70 = por %p68, %p69
      %p71 = scmp.ne.s32.totalorder %s63, %s66
      %p72 = scmp.eq.s32.totalorder %s27, 0
      %p73 = por %p71, %p72
      %p74 = scmp.ne.s32.totalorder %s63, %s66
      %p75 = scmp.eq.s32.totalorder %s32, 2
      %p76 = por %p74, %p75
      %p77 = scmp.ne.s32.totalorder %s66, %s67
      %p78 = scmp.eq.s32.totalorder %s32, 0
      %p79 = por %p77, %p78
      %p80 = scmp.ne.s32.totalorder %s66, %s67
      %p81 = scmp.eq.s32.totalorder %s33, 2
      %p82 = por %p80, %p81
      %p84 = scmp.ne.s32.totalorder %s67, %s83
      %p85 = scmp.eq.s32.totalorder %s33, 0
      %p86 = por %p84, %p85
      %s88 = sadd.s32 %s87, 1
      %p91 = scmp.eq.s32.totalorder %s27, 2
      %p92 = scmp.ne.s32.totalorder %s87, %s89
      %p93 = scmp.eq.s32.totalorder %s27, 0
      %p94 = por %p92, %p93
      %p95 = scmp.ne.s32.totalorder %s87, %s89
      %p96 = scmp.eq.s32.totalorder %s32, 2
      %p97 = por %p95, %p96
      %p98 = scmp.ne.s32.totalorder %s89, %s90
      %p99 = scmp.eq.s32.totalorder %s32, 0
      %p100 = por %p98, %p99
      %p101 = scmp.ne.s32.totalorder %s89, %s90
      %p102 = scmp.eq.s32.totalorder %s33, 2
      %p103 = por %p101, %p102
      %p105 = scmp.ne.s32.totalorder %s90, %s104
      %p106 = scmp.eq.s32.totalorder %s33, 0
      %p107 = por %p105, %p106
      %s109 = sadd.s32 %s108, 1
      %p112 = scmp.eq.s32.totalorder %s27, 2
      %p113 = scmp.ne.s32.totalorder %s108, %s110
      %p114 = scmp.eq.s32.totalorder %s27, 0
      %p115 = por %p113, %p114
      %p116 = scmp.ne.s32.totalorder %s108, %s110
      %p117 = scmp.eq.s32.totalorder %s32, 2
      %p118 = por %p116, %p117
      %p119 = scmp.ne.s32.totalorder %s110, %s111
      %p120 = scmp.eq.s32.totalorder %s32, 0
      %p121 = por %p119, %p120
      %p122 = scmp.ne.s32.totalorder %s110, %s111
      %p123 = scmp.eq.s32.totalorder %s33, 2
      %p124 = por %p122, %p123
      %p126 = scmp.ne.s32.totalorder %s111, %s125
      %p127 = scmp.eq.s32.totalorder %s33, 0
      %p128 = por %p126, %p127
      %s130 = sadd.s32 %s129, 1
      %p133 = scmp.eq.s32.totalorder %s27, 2
      %p134 = scmp.ne.s32.totalorder %s129, %s131
      %p135 = scmp.eq.s32.totalorder %s27, 0
      %p136 = por %p134, %p135
      %p137 = scmp.ne.s32.totalorder %s129, %s131
      %p138 = scmp.eq.s32.totalorder %s32, 2
      %p139 = por %p137, %p138
      %p140 = scmp.ne.s32.totalorder %s131, %s132
      %p141 = scmp.eq.s32.totalorder %s32, 0
      %p142 = por %p140, %p141
      %p143 = scmp.ne.s32.totalorder %s131, %s132
      %p144 = scmp.eq.s32.totalorder %s33, 2
      %p145 = por %p143, %p144
      %p147 = scmp.ne.s32.totalorder %s132, %s146
      %p148 = scmp.eq.s32.totalorder %s33, 0
      %p149 = por %p147, %p148
      %s150 = ssub.s32 %s27, %s34
      %p151 = scmp.eq.s32.totalorder %s150, 0
      %s153 = sadd.s32 %s152, 1
      %s154 = scalar_select %p151, %s152, %s153
      %p157 = pneg %p151
      %p158 = scmp.eq.s32.totalorder %s27, 2
      %p159 = por %p157, %p158
      %p160 = scmp.ne.s32.totalorder %s152, %s155
      %p161 = scmp.eq.s32.totalorder %s27, 0
      %p162 = por %p160, %p161
      %p163 = scmp.ne.s32.totalorder %s152, %s155
      %p164 = scmp.eq.s32.totalorder %s32, 2
      %p165 = por %p163, %p164
      %p166 = scmp.ne.s32.totalorder %s155, %s156
      %p167 = scmp.eq.s32.totalorder %s32, 0
      %p168 = por %p166, %p167
      %p169 = scmp.ne.s32.totalorder %s155, %s156
      %p170 = scmp.eq.s32.totalorder %s33, 2
      %p171 = por %p169, %p170
      %p173 = scmp.ne.s32.totalorder %s156, %s172
      %p174 = scmp.eq.s32.totalorder %s33, 0
      %p175 = por %p173, %p174
      %s176 = ssub.s32 %s27, %s34
      %p177 = scmp.eq.s32.totalorder %s176, 0
      %s179 = sadd.s32 %s178, 1
      %s180 = scalar_select %p177, %s178, %s179
      %p183 = pneg %p177
      %p184 = scmp.eq.s32.totalorder %s27, 2
      %p185 = por %p183, %p184
      %p186 = scmp.ne.s32.totalorder %s178, %s181
      %p187 = scmp.eq.s32.totalorder %s27, 0
      %p188 = por %p186, %p187
      %p189 = scmp.ne.s32.totalorder %s178, %s181
      %p190 = scmp.eq.s32.totalorder %s32, 2
      %p191 = por %p189, %p190
      %p192 = scmp.ne.s32.totalorder %s181, %s182
      %p193 = scmp.eq.s32.totalorder %s32, 0
      %p194 = por %p192, %p193
      %p195 = scmp.ne.s32.totalorder %s181, %s182
      %p196 = scmp.eq.s32.totalorder %s33, 2
      %p197 = por %p195, %p196
      %p199 = scmp.ne.s32.totalorder %s182, %s198
      %p200 = scmp.eq.s32.totalorder %s33, 0
      %p201 = por %p199, %p200
      %s202 = ssub.s32 %s27, %s34
      %p203 = scmp.eq.s32.totalorder %s202, 0
      %s205 = sadd.s32 %s204, 1
      %s206 = scalar_select %p203, %s204, %s205
      %p209 = pneg %p203
      %p210 = scmp.eq.s32.totalorder %s27, 2
      %p211 = por %p209, %p210
      %p212 = scmp.ne.s32.totalorder %s204, %s207
      %p213 = scmp.eq.s32.totalorder %s27, 0
      %p214 = por %p212, %p213
      %p215 = scmp.ne.s32.totalorder %s204, %s207
      %p216 = scmp.eq.s32.totalorder %s32, 2
      %p217 = por %p215, %p216
      %p218 = scmp.ne.s32.totalorder %s207, %s208
      %p219 = scmp.eq.s32.totalorder %s32, 0
      %p220 = por %p218, %p219
      %p221 = scmp.ne.s32.totalorder %s207, %s208
      %p222 = scmp.eq.s32.totalorder %s33, 2
      %p223 = por %p221, %p222
      %p225 = scmp.ne.s32.totalorder %s208, %s224
      %p226 = scmp.eq.s32.totalorder %s33, 0
      %p227 = por %p225, %p226
      %p228 = scmp.le.s32.totalorder 1, %s27
      %p229 = scmp.lt.s32.totalorder %s27, 4
      %p230 = pnand %p228, %p229
      %p231 = pneg %p230
      // Predicated region
      $region9: #{hand_object_loss_forward.1} parent=5 // pred_check
        _
      $region10: #{hand_object_loss_forward.1} parent=5 // pred_check_branch
        %233 = sbr.rel (%p230) target = $region12
      $region11: #{hand_object_loss_forward.1} parent=5 // pred_region
        %s234 = ssub.s32 %s27, 1
        // Predicated region
        $region13: #{hand_object_loss_forward.1} parent=11 // pred_check
          %p235 = pneg %p100
        $region14: #{hand_object_loss_forward.1} parent=11 // pred_check_branch
          %237 = sbr.rel (%p235) target = $region16
        $region15: #{hand_object_loss_forward.1} parent=11 // pred_region
          %239 = vsyncadd [#allocation6], 0
          %s240 = sshll.u32 %s2, 4
          %s241 = int_to_ptr.hbm [resolvable:$true] %s240
          %s242 = sshll.u32 [#allocation7], 4
          %s243 = int_to_ptr.vmem [resolvable:$true] %s242
          %248 = dma.hbm_to_vmem [thread:$0]  %s241, 2048, %s243, [#allocation6], 128, 128, 8
        $region16: #{hand_object_loss_forward.1} parent=11 // pred_fallthru
          _
        // Predicated region
        $region17: #{hand_object_loss_forward.1} parent=11 // pred_check
          %p249 = pneg %p121
        $region18: #{hand_object_loss_forward.1} parent=11 // pred_check_branch
          %251 = sbr.rel (%p249) target = $region20
        $region19: #{hand_object_loss_forward.1} parent=11 // pred_region
          %253 = vsyncadd [#allocation9], 0
          %s254 = sshll.u32 %s3, 4
          %s255 = int_to_ptr.hbm [resolvable:$true] %s254
          %s256 = sshll.u32 [#allocation8], 4
          %s257 = int_to_ptr.vmem [resolvable:$true] %s256
          %262 = dma.hbm_to_vmem [thread:$0]  %s255, 1024, %s257, [#allocation9], 64, 64, 4
        $region20: #{hand_object_loss_forward.1} parent=11 // pred_fallthru
          _
        // Predicated region
        $region21: #{hand_object_loss_forward.1} parent=11 // pred_check
          %p263 = pneg %p142
        $region22: #{hand_object_loss_forward.1} parent=11 // pred_check_branch
          %265 = sbr.rel (%p263) target = $region24
        $region23: #{hand_object_loss_forward.1} parent=11 // pred_region
          %267 = vsyncadd [#allocation9], 0
          %s268 = sshll.u32 %s4, 4
          %s269 = int_to_ptr.hbm [resolvable:$true] %s268
          %s270 = sshll.u32 [#allocation10], 4
          %s271 = int_to_ptr.vmem [resolvable:$true] %s270
          %276 = dma.hbm_to_vmem [thread:$0]  %s269, 1024, %s271, [#allocation9], 64, 64, 4
        $region24: #{hand_object_loss_forward.1} parent=11 // pred_fallthru
          _
      $region12: #{hand_object_loss_forward.1} parent=5 // pred_fallthru
        _
      %p277 = scmp.lt.s32.totalorder %s27, 3
      // Predicated region
      $region25: #{hand_object_loss_forward.1} parent=5 // pred_check
        %p278 = pneg %p277
      $region26: #{hand_object_loss_forward.1} parent=5 // pred_check_branch
        %280 = sbr.rel (%p278) target = $region28
      $region27: #{hand_object_loss_forward.1} parent=5 // pred_region
        // Predicated region
        $region29: #{hand_object_loss_forward.1} parent=27 // pred_check
          %p281 = pneg %p47
        $region30: #{hand_object_loss_forward.1} parent=27 // pred_check_branch
          %283 = sbr.rel (%p281) target = $region32
        $region31: #{hand_object_loss_forward.1} parent=27 // pred_region
          %s284 = sand.u32 %s37, 1
          %s285 = scalar_lea.sflag [#allocation3], %s284
          %s286 = sand.u32 %s37, 1
          %s287 = smul.addr %s286, 128
          %s288 = scalar_lea.vmem [#allocation2], %s287
          %290 = vsyncadd %s285, 0
          %s291 = smul.addr %s27, 16
          %s292 = smul.addr %s291, 8
          %s293 = scalar_lea.hbm %s0, %s292
          %s294 = sshll.u32 %s293, 4
          %s295 = int_to_ptr.hbm [resolvable:$true] %s294
          %s296 = sshll.u32 %s288, 4
          %s297 = int_to_ptr.vmem [resolvable:$true] %s296
          %302 = dma.hbm_to_vmem [thread:$0]  %s295, 2048, %s297, %s285, 128, 128, 8
        $region32: #{hand_object_loss_forward.1} parent=27 // pred_fallthru
          _
        // Predicated region
        $region33: #{hand_object_loss_forward.1} parent=27 // pred_check
          %p303 = pneg %p73
        $region34: #{hand_object_loss_forward.1} parent=27 // pred_check_branch
          %305 = sbr.rel (%p303) target = $region36
        $region35: #{hand_object_loss_forward.1} parent=27 // pred_region
          %s306 = sand.u32 %s27, 1
          %s307 = scalar_lea.sflag [#allocation6], %s306
          %s308 = sand.u32 %s63, 1
          %s309 = smul.addr %s308, 128
          %s310 = scalar_lea.vmem [#allocation5], %s309
          %312 = vsyncadd %s307, 0
          %s313 = smul.addr %s27, 16
          %s314 = smul.addr %s313, 8
          %s315 = scalar_lea.hbm %s1, %s314
          %s316 = sshll.u32 %s315, 4
          %s317 = int_to_ptr.hbm [resolvable:$true] %s316
          %s318 = sshll.u32 %s310, 4
          %s319 = int_to_ptr.vmem [resolvable:$true] %s318
          %324 = dma.hbm_to_vmem [thread:$0]  %s317, 2048, %s319, %s307, 128, 128, 8
        $region36: #{hand_object_loss_forward.1} parent=27 // pred_fallthru
          _
      $region28: #{hand_object_loss_forward.1} parent=5 // pred_fallthru
        _
      %p325 = scmp.le.s32.totalorder 1, %s27
      %p326 = scmp.lt.s32.totalorder %s27, 4
      %p327 = pnand %p325, %p326
      %p328 = pneg %p327
      // Predicated region
      $region37: #{hand_object_loss_forward.1} parent=5 // pred_check
        _
      $region38: #{hand_object_loss_forward.1} parent=5 // pred_check_branch
        %330 = sbr.rel (%p327) target = $region40
      $region39: #{hand_object_loss_forward.1} parent=5 // pred_region
        %s331 = ssub.s32 %s27, 1
        %s332 = sand.u32 %s40, 1
        %s333 = scalar_lea.sflag [#allocation3], %s332
        %s334 = sand.u32 %s40, 1
        %s335 = smul.addr %s334, 128
        %s336 = scalar_lea.vmem [#allocation2], %s335
        // Predicated region
        $region41: #{hand_object_loss_forward.1} parent=39 // pred_check
          %p337 = pneg %p53
        $region42: #{hand_object_loss_forward.1} parent=39 // pred_check_branch
          %339 = sbr.rel (%p337) target = $region44
        $region43: #{hand_object_loss_forward.1} parent=39 // pred_region
          %341 = dma.done %s333, 2048
        $region44: #{hand_object_loss_forward.1} parent=39 // pred_fallthru
          _
        %s342 = sand.u32 %s32, 1
        %s343 = scalar_lea.sflag [#allocation6], %s342
        %s344 = sand.u32 %s66, 1
        %s345 = smul.addr %s344, 128
        %s346 = scalar_lea.vmem [#allocation5], %s345
        // Predicated region
        $region45: #{hand_object_loss_forward.1} parent=39 // pred_check
          %p347 = pneg %p79
        $region46: #{hand_object_loss_forward.1} parent=39 // pred_check_branch
          %349 = sbr.rel (%p347) target = $region48
        $region47: #{hand_object_loss_forward.1} parent=39 // pred_region
          %351 = dma.done %s343, 2048
        $region48: #{hand_object_loss_forward.1} parent=39 // pred_fallthru
          _
        // Predicated region
        $region49: #{hand_object_loss_forward.1} parent=39 // pred_check
          %p352 = pneg %p100
        $region50: #{hand_object_loss_forward.1} parent=39 // pred_check_branch
          %354 = sbr.rel (%p352) target = $region52
        $region51: #{hand_object_loss_forward.1} parent=39 // pred_region
          %356 = dma.done [#allocation6], 2048
        $region52: #{hand_object_loss_forward.1} parent=39 // pred_fallthru
          _
        // Predicated region
        $region53: #{hand_object_loss_forward.1} parent=39 // pred_check
          %p357 = pneg %p121
        $region54: #{hand_object_loss_forward.1} parent=39 // pred_check_branch
          %359 = sbr.rel (%p357) target = $region56
        $region55: #{hand_object_loss_forward.1} parent=39 // pred_region
          %361 = dma.done [#allocation9], 1024
        $region56: #{hand_object_loss_forward.1} parent=39 // pred_fallthru
          _
        // Predicated region
        $region57: #{hand_object_loss_forward.1} parent=39 // pred_check
          %p362 = pneg %p142
        $region58: #{hand_object_loss_forward.1} parent=39 // pred_check_branch
          %364 = sbr.rel (%p362) target = $region60
        $region59: #{hand_object_loss_forward.1} parent=39 // pred_region
          %366 = dma.done [#allocation9], 1024
        $region60: #{hand_object_loss_forward.1} parent=39 // pred_fallthru
          _
        %s367 = sand.u32 %s40, 1
        %s368 = scalar_lea.sflag [#allocation3], %s367
        %s369 = sand.u32 %s40, 1
        %s370 = smul.addr %s369, 128
        %s371 = scalar_lea.vmem [#allocation2], %s370
        %p372 = pneg %p53
        %p373 = pneg %p50
        %s374 = sand.u32 %s32, 1
        %s375 = scalar_lea.sflag [#allocation6], %s374
        %s376 = sand.u32 %s66, 1
        %s377 = smul.addr %s376, 128
        %s378 = scalar_lea.vmem [#allocation5], %s377
        %p379 = pneg %p79
        %p380 = pneg %p76
        %p381 = pneg %p100
        %p382 = pneg %p97
        %p383 = pneg %p121
        %p384 = pneg %p118
        %p385 = pneg %p142
        %p386 = pneg %p139
        %p387 = pneg %p168
        %p388 = pneg %p165
        %s389 = sand.u32 %s155, 1
        %s390 = scalar_lea.sflag [#allocation4], %s389
        %s391 = sand.u32 %s155, 1
        %s392 = smul.addr %s391, 128
        %s393 = scalar_lea.vmem [#allocation11], %s392
        %p394 = pneg %p194
        %p395 = pneg %p191
        %s396 = sand.u32 %s181, 1
        %s397 = scalar_lea.sflag [#allocation13], %s396
        %s398 = sand.u32 %s181, 1
        %s399 = smul.addr %s398, 128
        %s400 = scalar_lea.vmem [#allocation12], %s399
        %p401 = pneg %p220
        %p402 = pneg %p217
        %p403 = scmp.lt.s32.totalorder %s32, 2
        %s404 = scalar_select %p403, %s32, 2
        %s405 = scalar_lea.vmem %s7, %s404
        %p406 = scmp.lt.s32.totalorder %s32, 2
        %s407 = scalar_select %p406, %s32, 2
        %s408 = scalar_lea.vmem %s7, %s407
        %v409 = vld [vmem:[#allocation7] sm:$0xff]
        %v410 = vld [vmem:[#allocation7 + $0x8] sm:$0xff]
        %v411 = vld [vmem:[#allocation7 + $0x10] sm:$0xff]
        %v412 = vld [vmem:[#allocation7 + $0x18] sm:$0xff]
        %v413 = vld [vmem:[#allocation7 + $0x20] sm:$0xff]
        %v414 = vld [vmem:[#allocation7 + $0x28] sm:$0xff]
        %v415 = vld [vmem:[#allocation7 + $0x30] sm:$0xff]
        %v416 = vld [vmem:[#allocation7 + $0x38] sm:$0xff]
        %v417 = vld [vmem:[#allocation7 + $0x40] sm:$0xff]
        %v418 = vld [vmem:[#allocation7 + $0x48] sm:$0xff]
        %v419 = vld [vmem:[#allocation7 + $0x50] sm:$0xff]
        %v420 = vld [vmem:[#allocation7 + $0x58] sm:$0xff]
        %v421 = vld [vmem:[#allocation7 + $0x60] sm:$0xff]
        %v422 = vld [vmem:[#allocation7 + $0x68] sm:$0xff]
        %v423 = vld [vmem:[#allocation7 + $0x70] sm:$0xff]
        %v424 = vld [vmem:[#allocation7 + $0x78] sm:$0xff]
        %v425 = vsub.f32 1.0, %v409
        %v426 = vsub.f32 1.0, %v410
        %v427 = vsub.f32 1.0, %v411
        %v428 = vsub.f32 1.0, %v412
        %v429 = vsub.f32 1.0, %v413
        %v430 = vsub.f32 1.0, %v414
        %v431 = vsub.f32 1.0, %v415
        %v432 = vsub.f32 1.0, %v416
        %v433 = vsub.f32 1.0, %v417
        %v434 = vsub.f32 1.0, %v418
        %v435 = vsub.f32 1.0, %v419
        %v436 = vsub.f32 1.0, %v420
        %v437 = vsub.f32 1.0, %v421
        %v438 = vsub.f32 1.0, %v422
        %v439 = vsub.f32 1.0, %v423
        %v440 = vsub.f32 1.0, %v424
        %v441 = vld [vmem:[%s336] sm:$0xff]
        %v442 = vld [vmem:[%s336 + $0x8] sm:$0xff]
        %v443 = vld [vmem:[%s336 + $0x10] sm:$0xff]
        %v444 = vld [vmem:[%s336 + $0x18] sm:$0xff]
        %v445 = vld [vmem:[%s336 + $0x20] sm:$0xff]
        %v446 = vld [vmem:[%s336 + $0x28] sm:$0xff]
        %v447 = vld [vmem:[%s336 + $0x30] sm:$0xff]
        %v448 = vld [vmem:[%s336 + $0x38] sm:$0xff]
        %v449 = vld [vmem:[%s336 + $0x40] sm:$0xff]
        %v450 = vld [vmem:[%s336 + $0x48] sm:$0xff]
        %v451 = vld [vmem:[%s336 + $0x50] sm:$0xff]
        %v452 = vld [vmem:[%s336 + $0x58] sm:$0xff]
        %v453 = vld [vmem:[%s336 + $0x60] sm:$0xff]
        %v454 = vld [vmem:[%s336 + $0x68] sm:$0xff]
        %v455 = vld [vmem:[%s336 + $0x70] sm:$0xff]
        %v456 = vld [vmem:[%s336 + $0x78] sm:$0xff]
        %v457 = vld [vmem:[%s346] sm:$0xff]
        %v458 = vld [vmem:[%s346 + $0x8] sm:$0xff]
        %v459 = vld [vmem:[%s346 + $0x10] sm:$0xff]
        %v460 = vld [vmem:[%s346 + $0x18] sm:$0xff]
        %v461 = vld [vmem:[%s346 + $0x20] sm:$0xff]
        %v462 = vld [vmem:[%s346 + $0x28] sm:$0xff]
        %v463 = vld [vmem:[%s346 + $0x30] sm:$0xff]
        %v464 = vld [vmem:[%s346 + $0x38] sm:$0xff]
        %v465 = vld [vmem:[%s346 + $0x40] sm:$0xff]
        %v466 = vld [vmem:[%s346 + $0x48] sm:$0xff]
        %v467 = vld [vmem:[%s346 + $0x50] sm:$0xff]
        %v468 = vld [vmem:[%s346 + $0x58] sm:$0xff]
        %v469 = vld [vmem:[%s346 + $0x60] sm:$0xff]
        %v470 = vld [vmem:[%s346 + $0x68] sm:$0xff]
        %v471 = vld [vmem:[%s346 + $0x70] sm:$0xff]
        %v472 = vld [vmem:[%s346 + $0x78] sm:$0xff]
        %v473 = vmul.f32 %v441, %v409
        %v474 = vmul.f32 %v442, %v410
        %v475 = vmul.f32 %v443, %v411
        %v476 = vmul.f32 %v444, %v412
        %v477 = vmul.f32 %v445, %v413
        %v478 = vmul.f32 %v446, %v414
        %v479 = vmul.f32 %v447, %v415
        %v480 = vmul.f32 %v448, %v416
        %v481 = vmul.f32 %v449, %v417
        %v482 = vmul.f32 %v450, %v418
        %v483 = vmul.f32 %v451, %v419
        %v484 = vmul.f32 %v452, %v420
        %v485 = vmul.f32 %v453, %v421
        %v486 = vmul.f32 %v454, %v422
        %v487 = vmul.f32 %v455, %v423
        %v488 = vmul.f32 %v456, %v424
        %v489 = vadd.f32 %v473, %v425
        %v490 = vadd.f32 %v474, %v426
        %v491 = vadd.f32 %v475, %v427
        %v492 = vadd.f32 %v476, %v428
        %v493 = vadd.f32 %v477, %v429
        %v494 = vadd.f32 %v478, %v430
        %v495 = vadd.f32 %v479, %v431
        %v496 = vadd.f32 %v480, %v432
        %v497 = vadd.f32 %v481, %v433
        %v498 = vadd.f32 %v482, %v434
        %v499 = vadd.f32 %v483, %v435
        %v500 = vadd.f32 %v484, %v436
        %v501 = vadd.f32 %v485, %v437
        %v502 = vadd.f32 %v486, %v438
        %v503 = vadd.f32 %v487, %v439
        %v504 = vadd.f32 %v488, %v440
        %v505 = vmul.f32 %v457, %v409
        %v506 = vmul.f32 %v458, %v410
        %v507 = vmul.f32 %v459, %v411
        %v508 = vmul.f32 %v460, %v412
        %v509 = vmul.f32 %v461, %v413
        %v510 = vmul.f32 %v462, %v414
        %v511 = vmul.f32 %v463, %v415
        %v512 = vmul.f32 %v464, %v416
        %v513 = vmul.f32 %v465, %v417
        %v514 = vmul.f32 %v466, %v418
        %v515 = vmul.f32 %v467, %v419
        %v516 = vmul.f32 %v468, %v420
        %v517 = vmul.f32 %v469, %v421
        %v518 = vmul.f32 %v470, %v422
        %v519 = vmul.f32 %v471, %v423
        %v520 = vmul.f32 %v472, %v424
        %v521 = vadd.f32 %v505, %v425
        %v522 = vadd.f32 %v506, %v426
        %v523 = vadd.f32 %v507, %v427
        %v524 = vadd.f32 %v508, %v428
        %v525 = vadd.f32 %v509, %v429
        %v526 = vadd.f32 %v510, %v430
        %v527 = vadd.f32 %v511, %v431
        %v528 = vadd.f32 %v512, %v432
        %v529 = vadd.f32 %v513, %v433
        %v530 = vadd.f32 %v514, %v434
        %v531 = vadd.f32 %v515, %v435
        %v532 = vadd.f32 %v516, %v436
        %v533 = vadd.f32 %v517, %v437
        %v534 = vadd.f32 %v518, %v438
        %v535 = vadd.f32 %v519, %v439
        %v536 = vadd.f32 %v520, %v440
        %537 = vst [vmem:[%s393] sm:$0xff] %v489
        %538 = vst [vmem:[%s393 + $0x8] sm:$0xff] %v490
        %539 = vst [vmem:[%s393 + $0x10] sm:$0xff] %v491
        %540 = vst [vmem:[%s393 + $0x18] sm:$0xff] %v492
        %541 = vst [vmem:[%s393 + $0x20] sm:$0xff] %v493
        %542 = vst [vmem:[%s393 + $0x28] sm:$0xff] %v494
        %543 = vst [vmem:[%s393 + $0x30] sm:$0xff] %v495
        %544 = vst [vmem:[%s393 + $0x38] sm:$0xff] %v496
        %545 = vst [vmem:[%s393 + $0x40] sm:$0xff] %v497
        %546 = vst [vmem:[%s393 + $0x48] sm:$0xff] %v498
        %547 = vst [vmem:[%s393 + $0x50] sm:$0xff] %v499
        %548 = vst [vmem:[%s393 + $0x58] sm:$0xff] %v500
        %549 = vst [vmem:[%s393 + $0x60] sm:$0xff] %v501
        %550 = vst [vmem:[%s393 + $0x68] sm:$0xff] %v502
        %551 = vst [vmem:[%s393 + $0x70] sm:$0xff] %v503
        %552 = vst [vmem:[%s393 + $0x78] sm:$0xff] %v504
        %553 = vst [vmem:[%s400] sm:$0xff] %v521
        %554 = vst [vmem:[%s400 + $0x8] sm:$0xff] %v522
        %555 = vst [vmem:[%s400 + $0x10] sm:$0xff] %v523
        %556 = vst [vmem:[%s400 + $0x18] sm:$0xff] %v524
        %557 = vst [vmem:[%s400 + $0x20] sm:$0xff] %v525
        %558 = vst [vmem:[%s400 + $0x28] sm:$0xff] %v526
        %559 = vst [vmem:[%s400 + $0x30] sm:$0xff] %v527
        %560 = vst [vmem:[%s400 + $0x38] sm:$0xff] %v528
        %561 = vst [vmem:[%s400 + $0x40] sm:$0xff] %v529
        %562 = vst [vmem:[%s400 + $0x48] sm:$0xff] %v530
        %563 = vst [vmem:[%s400 + $0x50] sm:$0xff] %v531
        %564 = vst [vmem:[%s400 + $0x58] sm:$0xff] %v532
        %565 = vst [vmem:[%s400 + $0x60] sm:$0xff] %v533
        %566 = vst [vmem:[%s400 + $0x68] sm:$0xff] %v534
        %567 = vst [vmem:[%s400 + $0x70] sm:$0xff] %v535
        %568 = vst [vmem:[%s400 + $0x78] sm:$0xff] %v536
        %v569 = vsub.f32 %v521, %v489
        %v570 = vsub.f32 %v522, %v490
        %v571 = vsub.f32 %v523, %v491
        %v572 = vsub.f32 %v524, %v492
        %v573 = vsub.f32 %v525, %v493
        %v574 = vsub.f32 %v526, %v494
        %v575 = vsub.f32 %v527, %v495
        %v576 = vsub.f32 %v528, %v496
        %v577 = vsub.f32 %v529, %v497
        %v578 = vsub.f32 %v530, %v498
        %v579 = vsub.f32 %v531, %v499
        %v580 = vsub.f32 %v532, %v500
        %v581 = vsub.f32 %v533, %v501
        %v582 = vsub.f32 %v534, %v502
        %v583 = vsub.f32 %v535, %v503
        %v584 = vsub.f32 %v536, %v504
        %v585 = vand.u32 2147483647, %v569
        %v586 = vand.u32 2147483647, %v570
        %v587 = vand.u32 2147483647, %v571
        %v588 = vand.u32 2147483647, %v572
        %v589 = vand.u32 2147483647, %v573
        %v590 = vand.u32 2147483647, %v574
        %v591 = vand.u32 2147483647, %v575
        %v592 = vand.u32 2147483647, %v576
        %v593 = vand.u32 2147483647, %v577
        %v594 = vand.u32 2147483647, %v578
        %v595 = vand.u32 2147483647, %v579
        %v596 = vand.u32 2147483647, %v580
        %v597 = vand.u32 2147483647, %v581
        %v598 = vand.u32 2147483647, %v582
        %v599 = vand.u32 2147483647, %v583
        %v600 = vand.u32 2147483647, %v584
        %v601 = vmul.f32 %v585, %v409
        %v602 = vmul.f32 %v586, %v410
        %v603 = vmul.f32 %v587, %v411
        %v604 = vmul.f32 %v588, %v412
        %v605 = vmul.f32 %v589, %v413
        %v606 = vmul.f32 %v590, %v414
        %v607 = vmul.f32 %v591, %v415
        %v608 = vmul.f32 %v592, %v416
        %v609 = vmul.f32 %v593, %v417
        %v610 = vmul.f32 %v594, %v418
        %v611 = vmul.f32 %v595, %v419
        %v612 = vmul.f32 %v596, %v420
        %v613 = vmul.f32 %v597, %v421
        %v614 = vmul.f32 %v598, %v422
        %v615 = vmul.f32 %v599, %v423
        %v616 = vmul.f32 %v600, %v424
        %v617 = vadd.f32 %v601, %v602
        %v618 = vadd.f32 %v617, %v603
        %v619 = vadd.f32 %v618, %v604
        %v620 = vadd.f32 %v619, %v605
        %v621 = vadd.f32 %v620, %v606
        %v622 = vadd.f32 %v621, %v607
        %v623 = vadd.f32 %v622, %v608
        %v624 = vadd.f32 %v623, %v609
        %v625 = vadd.f32 %v624, %v610
        %v626 = vadd.f32 %v625, %v611
        %v627 = vadd.f32 %v626, %v612
        %v628 = vadd.f32 %v627, %v613
        %v629 = vadd.f32 %v628, %v614
        %v630 = vadd.f32 %v629, %v615
        %v631 = vadd.f32 %v630, %v616
        %632 = vadd.xlane.f32.xlu0 %v631
        %v633 = vpop.xlane.xlu0 %632
        %v634 = vrot.slane %v633, 4
        %v635 = vadd.f32 %v633, %v634
        %v636 = vrot.slane %v635, 2
        %v637 = vadd.f32 %v635, %v636
        %v638 = vrot.slane %v637, 1
        %v639 = vadd.f32 %v637, %v638
        %s640 = vtos %v639
        %v641 = vmul.f32 %v521, %v521
        %v642 = vmul.f32 %v522, %v522
        %v643 = vmul.f32 %v523, %v523
        %v644 = vmul.f32 %v524, %v524
        %v645 = vmul.f32 %v525, %v525
        %v646 = vmul.f32 %v526, %v526
        %v647 = vmul.f32 %v527, %v527
        %v648 = vmul.f32 %v528, %v528
        %v649 = vmul.f32 %v529, %v529
        %v650 = vmul.f32 %v530, %v530
        %v651 = vmul.f32 %v531, %v531
        %v652 = vmul.f32 %v532, %v532
        %v653 = vmul.f32 %v533, %v533
        %v654 = vmul.f32 %v534, %v534
        %v655 = vmul.f32 %v535, %v535
        %v656 = vmul.f32 %v536, %v536
        %v657 = vmul.f32 %v489, %v489
        %v658 = vmul.f32 %v490, %v490
        %v659 = vmul.f32 %v491, %v491
        %v660 = vmul.f32 %v492, %v492
        %v661 = vmul.f32 %v493, %v493
        %v662 = vmul.f32 %v494, %v494
        %v663 = vmul.f32 %v495, %v495
        %v664 = vmul.f32 %v496, %v496
        %v665 = vmul.f32 %v497, %v497
        %v666 = vmul.f32 %v498, %v498
        %v667 = vmul.f32 %v499, %v499
        %v668 = vmul.f32 %v500, %v500
        %v669 = vmul.f32 %v501, %v501
        %v670 = vmul.f32 %v502, %v502
        %v671 = vmul.f32 %v503, %v503
        %v672 = vmul.f32 %v504, %v504
        %v673 = vmul.f32 %v521, %v489
        %v674 = vmul.f32 %v522, %v490
        %v675 = vmul.f32 %v523, %v491
        %v676 = vmul.f32 %v524, %v492
        %v677 = vmul.f32 %v525, %v493
        %v678 = vmul.f32 %v526, %v494
        %v679 = vmul.f32 %v527, %v495
        %v680 = vmul.f32 %v528, %v496
        %v681 = vmul.f32 %v529, %v497
        %v682 = vmul.f32 %v530, %v498
        %v683 = vmul.f32 %v531, %v499
        %v684 = vmul.f32 %v532, %v500
        %v685 = vmul.f32 %v533, %v501
        %v686 = vmul.f32 %v534, %v502
        %v687 = vmul.f32 %v535, %v503
        %v688 = vmul.f32 %v536, %v504
        %v689 = vpack.c.bf16 %v521, %v521
        %v690 = vpack.c.bf16 %v522, %v522
        %v691 = vpack.c.bf16 %v523, %v523
        %v692 = vpack.c.bf16 %v524, %v524
        %v693 = vpack.c.bf16 %v525, %v525
        %v694 = vpack.c.bf16 %v526, %v526
        %v695 = vpack.c.bf16 %v527, %v527
        %v696 = vpack.c.bf16 %v528, %v528
        %v697 = vpack.c.bf16 %v529, %v529
        %v698 = vpack.c.bf16 %v530, %v530
        %v699 = vpack.c.bf16 %v531, %v531
        %v700 = vpack.c.bf16 %v532, %v532
        %v701 = vpack.c.bf16 %v533, %v533
        %v702 = vpack.c.bf16 %v534, %v534
        %v703 = vpack.c.bf16 %v535, %v535
        %v704 = vpack.c.bf16 %v536, %v536
        %v705 = vpack.c.bf16 %v489, %v489
        %v706 = vpack.c.bf16 %v490, %v490
        %v707 = vpack.c.bf16 %v491, %v491
        %v708 = vpack.c.bf16 %v492, %v492
        %v709 = vpack.c.bf16 %v493, %v493
        %v710 = vpack.c.bf16 %v494, %v494
        %v711 = vpack.c.bf16 %v495, %v495
        %v712 = vpack.c.bf16 %v496, %v496
        %v713 = vpack.c.bf16 %v497, %v497
        %v714 = vpack.c.bf16 %v498, %v498
        %v715 = vpack.c.bf16 %v499, %v499
        %v716 = vpack.c.bf16 %v500, %v500
        %v717 = vpack.c.bf16 %v501, %v501
        %v718 = vpack.c.bf16 %v502, %v502
        %v719 = vpack.c.bf16 %v503, %v503
        %v720 = vpack.c.bf16 %v504, %v504
        %v721 = vpack.c.bf16 %v641, %v641
        %v722 = vpack.c.bf16 %v642, %v642
        %v723 = vpack.c.bf16 %v643, %v643
        %v724 = vpack.c.bf16 %v644, %v644
        %v725 = vpack.c.bf16 %v645, %v645
        %v726 = vpack.c.bf16 %v646, %v646
        %v727 = vpack.c.bf16 %v647, %v647
        %v728 = vpack.c.bf16 %v648, %v648
        %v729 = vpack.c.bf16 %v649, %v649
        %v730 = vpack.c.bf16 %v650, %v650
        %v731 = vpack.c.bf16 %v651, %v651
        %v732 = vpack.c.bf16 %v652, %v652
        %v733 = vpack.c.bf16 %v653, %v653
        %v734 = vpack.c.bf16 %v654, %v654
        %v735 = vpack.c.bf16 %v655, %v655
        %v736 = vpack.c.bf16 %v656, %v656
        %v737 = vpack.c.bf16 %v657, %v657
        %v738 = vpack.c.bf16 %v658, %v658
        %v739 = vpack.c.bf16 %v659, %v659
        %v740 = vpack.c.bf16 %v660, %v660
        %v741 = vpack.c.bf16 %v661, %v661
        %v742 = vpack.c.bf16 %v662, %v662
        %v743 = vpack.c.bf16 %v663, %v663
        %v744 = vpack.c.bf16 %v664, %v664
        %v745 = vpack.c.bf16 %v665, %v665
        %v746 = vpack.c.bf16 %v666, %v666
        %v747 = vpack.c.bf16 %v667, %v667
        %v748 = vpack.c.bf16 %v668, %v668
        %v749 = vpack.c.bf16 %v669, %v669
        %v750 = vpack.c.bf16 %v670, %v670
        %v751 = vpack.c.bf16 %v671, %v671
        %v752 = vpack.c.bf16 %v672, %v672
        %v753 = vpack.c.bf16 %v673, %v673
        %v754 = vpack.c.bf16 %v674, %v674
        %v755 = vpack.c.bf16 %v675, %v675
        %v756 = vpack.c.bf16 %v676, %v676
        %v757 = vpack.c.bf16 %v677, %v677
        %v758 = vpack.c.bf16 %v678, %v678
        %v759 = vpack.c.bf16 %v679, %v679
        %v760 = vpack.c.bf16 %v680, %v680
        %v761 = vpack.c.bf16 %v681, %v681
        %v762 = vpack.c.bf16 %v682, %v682
        %v763 = vpack.c.bf16 %v683, %v683
        %v764 = vpack.c.bf16 %v684, %v684
        %v765 = vpack.c.bf16 %v685, %v685
        %v766 = vpack.c.bf16 %v686, %v686
        %v767 = vpack.c.bf16 %v687, %v687
        %v768 = vpack.c.bf16 %v688, %v688
        %v785 = vunpack.c.l.b16 %v689
        %v786 = vunpack.c.l.b16 %v690
        %v787 = vunpack.c.l.b16 %v691
        %v788 = vunpack.c.l.b16 %v692
        %v789 = vunpack.c.l.b16 %v693
        %v790 = vunpack.c.l.b16 %v694
        %v791 = vunpack.c.l.b16 %v695
        %v792 = vunpack.c.l.b16 %v696
        %v793 = vunpack.c.l.b16 %v697
        %v794 = vunpack.c.l.b16 %v698
        %v795 = vunpack.c.l.b16 %v699
        %v796 = vunpack.c.l.b16 %v700
        %v797 = vunpack.c.l.b16 %v701
        %v798 = vunpack.c.l.b16 %v702
        %v799 = vunpack.c.l.b16 %v703
        %v800 = vunpack.c.l.b16 %v704
        %v801 = vpack.c.b16 %v786, %v785
        %v802 = vpack.c.b16 %v788, %v787
        %v803 = vpack.c.b16 %v790, %v789
        %v804 = vpack.c.b16 %v792, %v791
        %v805 = vpack.c.b16 %v794, %v793
        %v806 = vpack.c.b16 %v796, %v795
        %v807 = vpack.c.b16 %v798, %v797
        %v808 = vpack.c.b16 %v800, %v799
        %v833 = vunpack.c.l.b16 %v705
        %v834 = vunpack.c.l.b16 %v706
        %v835 = vunpack.c.l.b16 %v707
        %v836 = vunpack.c.l.b16 %v708
        %v837 = vunpack.c.l.b16 %v709
        %v838 = vunpack.c.l.b16 %v710
        %v839 = vunpack.c.l.b16 %v711
        %v840 = vunpack.c.l.b16 %v712
        %v841 = vunpack.c.l.b16 %v713
        %v842 = vunpack.c.l.b16 %v714
        %v843 = vunpack.c.l.b16 %v715
        %v844 = vunpack.c.l.b16 %v716
        %v845 = vunpack.c.l.b16 %v717
        %v846 = vunpack.c.l.b16 %v718
        %v847 = vunpack.c.l.b16 %v719
        %v848 = vunpack.c.l.b16 %v720
        %v849 = vpack.c.b16 %v834, %v833
        %v850 = vpack.c.b16 %v836, %v835
        %v851 = vpack.c.b16 %v838, %v837
        %v852 = vpack.c.b16 %v840, %v839
        %v853 = vpack.c.b16 %v842, %v841
        %v854 = vpack.c.b16 %v844, %v843
        %v855 = vpack.c.b16 %v846, %v845
        %v856 = vpack.c.b16 %v848, %v847
        %v881 = vunpack.c.l.b16 %v721
        %v882 = vunpack.c.l.b16 %v722
        %v883 = vunpack.c.l.b16 %v723
        %v884 = vunpack.c.l.b16 %v724
        %v885 = vunpack.c.l.b16 %v725
        %v886 = vunpack.c.l.b16 %v726
        %v887 = vunpack.c.l.b16 %v727
        %v888 = vunpack.c.l.b16 %v728
        %v889 = vunpack.c.l.b16 %v729
        %v890 = vunpack.c.l.b16 %v730
        %v891 = vunpack.c.l.b16 %v731
        %v892 = vunpack.c.l.b16 %v732
        %v893 = vunpack.c.l.b16 %v733
        %v894 = vunpack.c.l.b16 %v734
        %v895 = vunpack.c.l.b16 %v735
        %v896 = vunpack.c.l.b16 %v736
        %v897 = vpack.c.b16 %v882, %v881
        %v898 = vpack.c.b16 %v884, %v883
        %v899 = vpack.c.b16 %v886, %v885
        %v900 = vpack.c.b16 %v888, %v887
        %v901 = vpack.c.b16 %v890, %v889
        %v902 = vpack.c.b16 %v892, %v891
        %v903 = vpack.c.b16 %v894, %v893
        %v904 = vpack.c.b16 %v896, %v895
        %v929 = vunpack.c.l.b16 %v737
        %v930 = vunpack.c.l.b16 %v738
        %v931 = vunpack.c.l.b16 %v739
        %v932 = vunpack.c.l.b16 %v740
        %v933 = vunpack.c.l.b16 %v741
        %v934 = vunpack.c.l.b16 %v742
        %v935 = vunpack.c.l.b16 %v743
        %v936 = vunpack.c.l.b16 %v744
        %v937 = vunpack.c.l.b16 %v745
        %v938 = vunpack.c.l.b16 %v746
        %v939 = vunpack.c.l.b16 %v747
        %v940 = vunpack.c.l.b16 %v748
        %v941 = vunpack.c.l.b16 %v749
        %v942 = vunpack.c.l.b16 %v750
        %v943 = vunpack.c.l.b16 %v751
        %v944 = vunpack.c.l.b16 %v752
        %v945 = vpack.c.b16 %v930, %v929
        %v946 = vpack.c.b16 %v932, %v931
        %v947 = vpack.c.b16 %v934, %v933
        %v948 = vpack.c.b16 %v936, %v935
        %v949 = vpack.c.b16 %v938, %v937
        %v950 = vpack.c.b16 %v940, %v939
        %v951 = vpack.c.b16 %v942, %v941
        %v952 = vpack.c.b16 %v944, %v943
        %v977 = vunpack.c.l.b16 %v753
        %v978 = vunpack.c.l.b16 %v754
        %v979 = vunpack.c.l.b16 %v755
        %v980 = vunpack.c.l.b16 %v756
        %v981 = vunpack.c.l.b16 %v757
        %v982 = vunpack.c.l.b16 %v758
        %v983 = vunpack.c.l.b16 %v759
        %v984 = vunpack.c.l.b16 %v760
        %v985 = vunpack.c.l.b16 %v761
        %v986 = vunpack.c.l.b16 %v762
        %v987 = vunpack.c.l.b16 %v763
        %v988 = vunpack.c.l.b16 %v764
        %v989 = vunpack.c.l.b16 %v765
        %v990 = vunpack.c.l.b16 %v766
        %v991 = vunpack.c.l.b16 %v767
        %v992 = vunpack.c.l.b16 %v768
        %v993 = vpack.c.b16 %v978, %v977
        %v994 = vpack.c.b16 %v980, %v979
        %v995 = vpack.c.b16 %v982, %v981
        %v996 = vpack.c.b16 %v984, %v983
        %v997 = vpack.c.b16 %v986, %v985
        %v998 = vpack.c.b16 %v988, %v987
        %v999 = vpack.c.b16 %v990, %v989
        %v1000 = vpack.c.b16 %v992, %v991
        %v1009 = vld [vmem:[#allocation8] sm:$0xf]
        %v1010 = vld [vmem:[#allocation8 + $0x4] sm:$0xf]
        %v1011 = vld [vmem:[#allocation8 + $0x8] sm:$0xf]
        %v1012 = vld [vmem:[#allocation8 + $0xc] sm:$0xf]
        %v1013 = vld [vmem:[#allocation8 + $0x10] sm:$0xf]
        %v1014 = vld [vmem:[#allocation8 + $0x14] sm:$0xf]
        %v1015 = vld [vmem:[#allocation8 + $0x18] sm:$0xf]
        %v1016 = vld [vmem:[#allocation8 + $0x1c] sm:$0xf]
        %v1017 = vld [vmem:[#allocation8 + $0x20] sm:$0xf]
        %v1018 = vld [vmem:[#allocation8 + $0x24] sm:$0xf]
        %v1019 = vld [vmem:[#allocation8 + $0x28] sm:$0xf]
        %v1020 = vld [vmem:[#allocation8 + $0x2c] sm:$0xf]
        %v1021 = vld [vmem:[#allocation8 + $0x30] sm:$0xf]
        %v1022 = vld [vmem:[#allocation8 + $0x34] sm:$0xf]
        %v1023 = vld [vmem:[#allocation8 + $0x38] sm:$0xf]
        %v1024 = vld [vmem:[#allocation8 + $0x3c] sm:$0xf]
        %v1041 = vunpack.c.l.b16 %v1009
        %v1042 = vunpack.c.l.b16 %v1010
        %v1043 = vunpack.c.l.b16 %v1011
        %v1044 = vunpack.c.l.b16 %v1012
        %v1045 = vunpack.c.l.b16 %v1013
        %v1046 = vunpack.c.l.b16 %v1014
        %v1047 = vunpack.c.l.b16 %v1015
        %v1048 = vunpack.c.l.b16 %v1016
        %v1049 = vunpack.c.l.b16 %v1017
        %v1050 = vunpack.c.l.b16 %v1018
        %v1051 = vunpack.c.l.b16 %v1019
        %v1052 = vunpack.c.l.b16 %v1020
        %v1053 = vunpack.c.l.b16 %v1021
        %v1054 = vunpack.c.l.b16 %v1022
        %v1055 = vunpack.c.l.b16 %v1023
        %v1056 = vunpack.c.l.b16 %v1024
        %v1057 = vpack.c.b16 %v1042, %v1041
        %v1058 = vpack.c.b16 %v1044, %v1043
        %v1059 = vpack.c.b16 %v1046, %v1045
        %v1060 = vpack.c.b16 %v1048, %v1047
        %v1061 = vpack.c.b16 %v1050, %v1049
        %v1062 = vpack.c.b16 %v1052, %v1051
        %v1063 = vpack.c.b16 %v1054, %v1053
        %v1064 = vpack.c.b16 %v1056, %v1055
        %1073 = vmatpush.bf16.msra.mxu0 %v808
        %1074 = vmatpush.bf16.msra.mxu0 %v807
        %1075 = vmatpush.bf16.msra.mxu0 %v806
        %1076 = vmatpush.bf16.msra.mxu0 %v805
        %1077 = vmatpush.bf16.msra.mxu0 %v804
        %1078 = vmatpush.bf16.msra.mxu0 %v803
        %1079 = vmatpush.bf16.msra.mxu0 %v802
        %1080 = vmatpush.bf16.msra.mxu0 %v801
        %1081 = vmatmul.bf16.gmra.mxu0 %v1057
        %v1082 = vpop.f32.mrf.mxu0
        %v1083 = vadd.f32 0.0, %v1082
        %v1084 = vpop.f32.mrf.mxu0
        %v1085 = vadd.f32 0.0, %v1084
        %1086 = vmatmul.bf16.gmra.mxu0 %v1058
        %v1087 = vpop.f32.mrf.mxu0
        %v1088 = vadd.f32 0.0, %v1087
        %v1089 = vpop.f32.mrf.mxu0
        %v1090 = vadd.f32 0.0, %v1089
        %1091 = vmatmul.bf16.gmra.mxu0 %v1059
        %v1092 = vpop.f32.mrf.mxu0
        %v1093 = vadd.f32 0.0, %v1092
        %v1094 = vpop.f32.mrf.mxu0
        %v1095 = vadd.f32 0.0, %v1094
        %1096 = vmatmul.bf16.gmra.mxu0 %v1060
        %v1097 = vpop.f32.mrf.mxu0
        %v1098 = vadd.f32 0.0, %v1097
        %v1099 = vpop.f32.mrf.mxu0
        %v1100 = vadd.f32 0.0, %v1099
        %1101 = vmatmul.bf16.gmra.mxu0 %v1061
        %v1102 = vpop.f32.mrf.mxu0
        %v1103 = vadd.f32 0.0, %v1102
        %v1104 = vpop.f32.mrf.mxu0
        %v1105 = vadd.f32 0.0, %v1104
        %1106 = vmatmul.bf16.gmra.mxu0 %v1062
        %v1107 = vpop.f32.mrf.mxu0
        %v1108 = vadd.f32 0.0, %v1107
        %v1109 = vpop.f32.mrf.mxu0
        %v1110 = vadd.f32 0.0, %v1109
        %1111 = vmatmul.bf16.gmra.mxu0 %v1063
        %v1112 = vpop.f32.mrf.mxu0
        %v1113 = vadd.f32 0.0, %v1112
        %v1114 = vpop.f32.mrf.mxu0
        %v1115 = vadd.f32 0.0, %v1114
        %1116 = vmatmul.bf16.gmra.mxu0 %v1064
        %v1117 = vpop.f32.mrf.mxu0
        %v1118 = vadd.f32 0.0, %v1117
        %v1119 = vpop.f32.mrf.mxu0
        %v1120 = vadd.f32 0.0, %v1119
        %1121 = vdwg.mxu0
        %1122 = vmatpush.bf16.msra.mxu0 %v856
        %1123 = vmatpush.bf16.msra.mxu0 %v855
        %1124 = vmatpush.bf16.msra.mxu0 %v854
        %1125 = vmatpush.bf16.msra.mxu0 %v853
        %1126 = vmatpush.bf16.msra.mxu0 %v852
        %1127 = vmatpush.bf16.msra.mxu0 %v851
        %1128 = vmatpush.bf16.msra.mxu0 %v850
        %1129 = vmatpush.bf16.msra.mxu0 %v849
        %1130 = vmatmul.bf16.gmra.mxu0 %v1057
        %v1131 = vpop.f32.mrf.mxu0
        %v1132 = vadd.f32 0.0, %v1131
        %v1133 = vpop.f32.mrf.mxu0
        %v1134 = vadd.f32 0.0, %v1133
        %1135 = vmatmul.bf16.gmra.mxu0 %v1058
        %v1136 = vpop.f32.mrf.mxu0
        %v1137 = vadd.f32 0.0, %v1136
        %v1138 = vpop.f32.mrf.mxu0
        %v1139 = vadd.f32 0.0, %v1138
        %1140 = vmatmul.bf16.gmra.mxu0 %v1059
        %v1141 = vpop.f32.mrf.mxu0
        %v1142 = vadd.f32 0.0, %v1141
        %v1143 = vpop.f32.mrf.mxu0
        %v1144 = vadd.f32 0.0, %v1143
        %1145 = vmatmul.bf16.gmra.mxu0 %v1060
        %v1146 = vpop.f32.mrf.mxu0
        %v1147 = vadd.f32 0.0, %v1146
        %v1148 = vpop.f32.mrf.mxu0
        %v1149 = vadd.f32 0.0, %v1148
        %1150 = vmatmul.bf16.gmra.mxu0 %v1061
        %v1151 = vpop.f32.mrf.mxu0
        %v1152 = vadd.f32 0.0, %v1151
        %v1153 = vpop.f32.mrf.mxu0
        %v1154 = vadd.f32 0.0, %v1153
        %1155 = vmatmul.bf16.gmra.mxu0 %v1062
        %v1156 = vpop.f32.mrf.mxu0
        %v1157 = vadd.f32 0.0, %v1156
        %v1158 = vpop.f32.mrf.mxu0
        %v1159 = vadd.f32 0.0, %v1158
        %1160 = vmatmul.bf16.gmra.mxu0 %v1063
        %v1161 = vpop.f32.mrf.mxu0
        %v1162 = vadd.f32 0.0, %v1161
        %v1163 = vpop.f32.mrf.mxu0
        %v1164 = vadd.f32 0.0, %v1163
        %1165 = vmatmul.bf16.gmra.mxu0 %v1064
        %v1166 = vpop.f32.mrf.mxu0
        %v1167 = vadd.f32 0.0, %v1166
        %v1168 = vpop.f32.mrf.mxu0
        %v1169 = vadd.f32 0.0, %v1168
        %1170 = vdwg.mxu0
        %1171 = vmatpush.bf16.msra.mxu0 %v904
        %1172 = vmatpush.bf16.msra.mxu0 %v903
        %1173 = vmatpush.bf16.msra.mxu0 %v902
        %1174 = vmatpush.bf16.msra.mxu0 %v901
        %1175 = vmatpush.bf16.msra.mxu0 %v900
        %1176 = vmatpush.bf16.msra.mxu0 %v899
        %1177 = vmatpush.bf16.msra.mxu0 %v898
        %1178 = vmatpush.bf16.msra.mxu0 %v897
        %1179 = vmatmul.bf16.gmra.mxu0 %v1057
        %v1180 = vpop.f32.mrf.mxu0
        %v1181 = vadd.f32 0.0, %v1180
        %v1182 = vpop.f32.mrf.mxu0
        %v1183 = vadd.f32 0.0, %v1182
        %1184 = vmatmul.bf16.gmra.mxu0 %v1058
        %v1185 = vpop.f32.mrf.mxu0
        %v1186 = vadd.f32 0.0, %v1185
        %v1187 = vpop.f32.mrf.mxu0
        %v1188 = vadd.f32 0.0, %v1187
        %1189 = vmatmul.bf16.gmra.mxu0 %v1059
        %v1190 = vpop.f32.mrf.mxu0
        %v1191 = vadd.f32 0.0, %v1190
        %v1192 = vpop.f32.mrf.mxu0
        %v1193 = vadd.f32 0.0, %v1192
        %1194 = vmatmul.bf16.gmra.mxu0 %v1060
        %v1195 = vpop.f32.mrf.mxu0
        %v1196 = vadd.f32 0.0, %v1195
        %v1197 = vpop.f32.mrf.mxu0
        %v1198 = vadd.f32 0.0, %v1197
        %1199 = vmatmul.bf16.gmra.mxu0 %v1061
        %v1200 = vpop.f32.mrf.mxu0
        %v1201 = vadd.f32 0.0, %v1200
        %v1202 = vpop.f32.mrf.mxu0
        %v1203 = vadd.f32 0.0, %v1202
        %1204 = vmatmul.bf16.gmra.mxu0 %v1062
        %v1205 = vpop.f32.mrf.mxu0
        %v1206 = vadd.f32 0.0, %v1205
        %v1207 = vpop.f32.mrf.mxu0
        %v1208 = vadd.f32 0.0, %v1207
        %1209 = vmatmul.bf16.gmra.mxu0 %v1063
        %v1210 = vpop.f32.mrf.mxu0
        %v1211 = vadd.f32 0.0, %v1210
        %v1212 = vpop.f32.mrf.mxu0
        %v1213 = vadd.f32 0.0, %v1212
        %1214 = vmatmul.bf16.gmra.mxu0 %v1064
        %v1215 = vpop.f32.mrf.mxu0
        %v1216 = vadd.f32 0.0, %v1215
        %v1217 = vpop.f32.mrf.mxu0
        %v1218 = vadd.f32 0.0, %v1217
        %1219 = vdwg.mxu0
        %1220 = vmatpush.bf16.msra.mxu0 %v952
        %1221 = vmatpush.bf16.msra.mxu0 %v951
        %1222 = vmatpush.bf16.msra.mxu0 %v950
        %1223 = vmatpush.bf16.msra.mxu0 %v949
        %1224 = vmatpush.bf16.msra.mxu0 %v948
        %1225 = vmatpush.bf16.msra.mxu0 %v947
        %1226 = vmatpush.bf16.msra.mxu0 %v946
        %1227 = vmatpush.bf16.msra.mxu0 %v945
        %1228 = vmatmul.bf16.gmra.mxu0 %v1057
        %v1229 = vpop.f32.mrf.mxu0
        %v1230 = vadd.f32 0.0, %v1229
        %v1231 = vpop.f32.mrf.mxu0
        %v1232 = vadd.f32 0.0, %v1231
        %1233 = vmatmul.bf16.gmra.mxu0 %v1058
        %v1234 = vpop.f32.mrf.mxu0
        %v1235 = vadd.f32 0.0, %v1234
        %v1236 = vpop.f32.mrf.mxu0
        %v1237 = vadd.f32 0.0, %v1236
        %1238 = vmatmul.bf16.gmra.mxu0 %v1059
        %v1239 = vpop.f32.mrf.mxu0
        %v1240 = vadd.f32 0.0, %v1239
        %v1241 = vpop.f32.mrf.mxu0
        %v1242 = vadd.f32 0.0, %v1241
        %1243 = vmatmul.bf16.gmra.mxu0 %v1060
        %v1244 = vpop.f32.mrf.mxu0
        %v1245 = vadd.f32 0.0, %v1244
        %v1246 = vpop.f32.mrf.mxu0
        %v1247 = vadd.f32 0.0, %v1246
        %1248 = vmatmul.bf16.gmra.mxu0 %v1061
        %v1249 = vpop.f32.mrf.mxu0
        %v1250 = vadd.f32 0.0, %v1249
        %v1251 = vpop.f32.mrf.mxu0
        %v1252 = vadd.f32 0.0, %v1251
        %1253 = vmatmul.bf16.gmra.mxu0 %v1062
        %v1254 = vpop.f32.mrf.mxu0
        %v1255 = vadd.f32 0.0, %v1254
        %v1256 = vpop.f32.mrf.mxu0
        %v1257 = vadd.f32 0.0, %v1256
        %1258 = vmatmul.bf16.gmra.mxu0 %v1063
        %v1259 = vpop.f32.mrf.mxu0
        %v1260 = vadd.f32 0.0, %v1259
        %v1261 = vpop.f32.mrf.mxu0
        %v1262 = vadd.f32 0.0, %v1261
        %1263 = vmatmul.bf16.gmra.mxu0 %v1064
        %v1264 = vpop.f32.mrf.mxu0
        %v1265 = vadd.f32 0.0, %v1264
        %v1266 = vpop.f32.mrf.mxu0
        %v1267 = vadd.f32 0.0, %v1266
        %1268 = vdwg.mxu0
        %1269 = vmatpush.bf16.msra.mxu0 %v1000
        %1270 = vmatpush.bf16.msra.mxu0 %v999
        %1271 = vmatpush.bf16.msra.mxu0 %v998
        %1272 = vmatpush.bf16.msra.mxu0 %v997
        %1273 = vmatpush.bf16.msra.mxu0 %v996
        %1274 = vmatpush.bf16.msra.mxu0 %v995
        %1275 = vmatpush.bf16.msra.mxu0 %v994
        %1276 = vmatpush.bf16.msra.mxu0 %v993
        %1277 = vmatmul.bf16.gmra.mxu0 %v1057
        %v1278 = vpop.f32.mrf.mxu0
        %v1279 = vadd.f32 0.0, %v1278
        %v1280 = vpop.f32.mrf.mxu0
        %v1281 = vadd.f32 0.0, %v1280
        %1282 = vmatmul.bf16.gmra.mxu0 %v1058
        %v1283 = vpop.f32.mrf.mxu0
        %v1284 = vadd.f32 0.0, %v1283
        %v1285 = vpop.f32.mrf.mxu0
        %v1286 = vadd.f32 0.0, %v1285
        %1287 = vmatmul.bf16.gmra.mxu0 %v1059
        %v1288 = vpop.f32.mrf.mxu0
        %v1289 = vadd.f32 0.0, %v1288
        %v1290 = vpop.f32.mrf.mxu0
        %v1291 = vadd.f32 0.0, %v1290
        %1292 = vmatmul.bf16.gmra.mxu0 %v1060
        %v1293 = vpop.f32.mrf.mxu0
        %v1294 = vadd.f32 0.0, %v1293
        %v1295 = vpop.f32.mrf.mxu0
        %v1296 = vadd.f32 0.0, %v1295
        %1297 = vmatmul.bf16.gmra.mxu0 %v1061
        %v1298 = vpop.f32.mrf.mxu0
        %v1299 = vadd.f32 0.0, %v1298
        %v1300 = vpop.f32.mrf.mxu0
        %v1301 = vadd.f32 0.0, %v1300
        %1302 = vmatmul.bf16.gmra.mxu0 %v1062
        %v1303 = vpop.f32.mrf.mxu0
        %v1304 = vadd.f32 0.0, %v1303
        %v1305 = vpop.f32.mrf.mxu0
        %v1306 = vadd.f32 0.0, %v1305
        %1307 = vmatmul.bf16.gmra.mxu0 %v1063
        %v1308 = vpop.f32.mrf.mxu0
        %v1309 = vadd.f32 0.0, %v1308
        %v1310 = vpop.f32.mrf.mxu0
        %v1311 = vadd.f32 0.0, %v1310
        %1312 = vmatmul.bf16.gmra.mxu0 %v1064
        %v1313 = vpop.f32.mrf.mxu0
        %v1314 = vadd.f32 0.0, %v1313
        %v1315 = vpop.f32.mrf.mxu0
        %v1316 = vadd.f32 0.0, %v1315
        %1317 = vdwg.mxu0
        %v1318 = vpack.c.bf16 %v1085, %v1083
        %v1319 = vpack.c.bf16 %v1090, %v1088
        %v1320 = vpack.c.bf16 %v1095, %v1093
        %v1321 = vpack.c.bf16 %v1100, %v1098
        %v1322 = vpack.c.bf16 %v1105, %v1103
        %v1323 = vpack.c.bf16 %v1110, %v1108
        %v1324 = vpack.c.bf16 %v1115, %v1113
        %v1325 = vpack.c.bf16 %v1120, %v1118
        %v1326 = vpack.c.bf16 %v1134, %v1132
        %v1327 = vpack.c.bf16 %v1139, %v1137
        %v1328 = vpack.c.bf16 %v1144, %v1142
        %v1329 = vpack.c.bf16 %v1149, %v1147
        %v1330 = vpack.c.bf16 %v1154, %v1152
        %v1331 = vpack.c.bf16 %v1159, %v1157
        %v1332 = vpack.c.bf16 %v1164, %v1162
        %v1333 = vpack.c.bf16 %v1169, %v1167
        %v1334 = vpack.c.bf16 %v1183, %v1181
        %v1335 = vpack.c.bf16 %v1188, %v1186
        %v1336 = vpack.c.bf16 %v1193, %v1191
        %v1337 = vpack.c.bf16 %v1198, %v1196
        %v1338 = vpack.c.bf16 %v1203, %v1201
        %v1339 = vpack.c.bf16 %v1208, %v1206
        %v1340 = vpack.c.bf16 %v1213, %v1211
        %v1341 = vpack.c.bf16 %v1218, %v1216
        %v1342 = vpack.c.bf16 %v1232, %v1230
        %v1343 = vpack.c.bf16 %v1237, %v1235
        %v1344 = vpack.c.bf16 %v1242, %v1240
        %v1345 = vpack.c.bf16 %v1247, %v1245
        %v1346 = vpack.c.bf16 %v1252, %v1250
        %v1347 = vpack.c.bf16 %v1257, %v1255
        %v1348 = vpack.c.bf16 %v1262, %v1260
        %v1349 = vpack.c.bf16 %v1267, %v1265
        %v1350 = vpack.c.bf16 %v1281, %v1279
        %v1351 = vpack.c.bf16 %v1286, %v1284
        %v1352 = vpack.c.bf16 %v1291, %v1289
        %v1353 = vpack.c.bf16 %v1296, %v1294
        %v1354 = vpack.c.bf16 %v1301, %v1299
        %v1355 = vpack.c.bf16 %v1306, %v1304
        %v1356 = vpack.c.bf16 %v1311, %v1309
        %v1357 = vpack.c.bf16 %v1316, %v1314
        %v1358 = vld [vmem:[#allocation10] sm:$0xf]
        %v1359 = vld [vmem:[#allocation10 + $0x4] sm:$0xf]
        %v1360 = vld [vmem:[#allocation10 + $0x8] sm:$0xf]
        %v1361 = vld [vmem:[#allocation10 + $0xc] sm:$0xf]
        %v1362 = vld [vmem:[#allocation10 + $0x10] sm:$0xf]
        %v1363 = vld [vmem:[#allocation10 + $0x14] sm:$0xf]
        %v1364 = vld [vmem:[#allocation10 + $0x18] sm:$0xf]
        %v1365 = vld [vmem:[#allocation10 + $0x1c] sm:$0xf]
        %v1366 = vld [vmem:[#allocation10 + $0x20] sm:$0xf]
        %v1367 = vld [vmem:[#allocation10 + $0x24] sm:$0xf]
        %v1368 = vld [vmem:[#allocation10 + $0x28] sm:$0xf]
        %v1369 = vld [vmem:[#allocation10 + $0x2c] sm:$0xf]
        %v1370 = vld [vmem:[#allocation10 + $0x30] sm:$0xf]
        %v1371 = vld [vmem:[#allocation10 + $0x34] sm:$0xf]
        %v1372 = vld [vmem:[#allocation10 + $0x38] sm:$0xf]
        %v1373 = vld [vmem:[#allocation10 + $0x3c] sm:$0xf]
        %v1390 = vunpack.c.l.b16 %v1358
        %v1391 = vunpack.c.l.b16 %v1359
        %v1392 = vunpack.c.l.b16 %v1360
        %v1393 = vunpack.c.l.b16 %v1361
        %v1394 = vunpack.c.l.b16 %v1362
        %v1395 = vunpack.c.l.b16 %v1363
        %v1396 = vunpack.c.l.b16 %v1364
        %v1397 = vunpack.c.l.b16 %v1365
        %v1398 = vunpack.c.l.b16 %v1366
        %v1399 = vunpack.c.l.b16 %v1367
        %v1400 = vunpack.c.l.b16 %v1368
        %v1401 = vunpack.c.l.b16 %v1369
        %v1402 = vunpack.c.l.b16 %v1370
        %v1403 = vunpack.c.l.b16 %v1371
        %v1404 = vunpack.c.l.b16 %v1372
        %v1405 = vunpack.c.l.b16 %v1373
        %v1406 = vpack.c.b16 %v1391, %v1390
        %v1407 = vpack.c.b16 %v1393, %v1392
        %v1408 = vpack.c.b16 %v1395, %v1394
        %v1409 = vpack.c.b16 %v1397, %v1396
        %v1410 = vpack.c.b16 %v1399, %v1398
        %v1411 = vpack.c.b16 %v1401, %v1400
        %v1412 = vpack.c.b16 %v1403, %v1402
        %v1413 = vpack.c.b16 %v1405, %v1404
        %1422 = vmatpush.bf16.msra.mxu0 %v1413
        %1423 = vmatpush.bf16.msra.mxu0 %v1412
        %1424 = vmatpush.bf16.msra.mxu0 %v1411
        %1425 = vmatpush.bf16.msra.mxu0 %v1410
        %1426 = vmatpush.bf16.msra.mxu0 %v1409
        %1427 = vmatpush.bf16.msra.mxu0 %v1408
        %1428 = vmatpush.bf16.msra.mxu0 %v1407
        %1429 = vmatpush.bf16.msra.mxu0 %v1406
        %1430 = vmatmul.bf16.gmra.mxu0 %v1318
        %v1431 = vpop.f32.mrf.mxu0
        %v1432 = vadd.f32 0.0, %v1431
        %v1433 = vpop.f32.mrf.mxu0
        %v1434 = vadd.f32 0.0, %v1433
        %1435 = vmatmul.bf16.gmra.mxu0 %v1319
        %v1436 = vpop.f32.mrf.mxu0
        %v1437 = vadd.f32 0.0, %v1436
        %v1438 = vpop.f32.mrf.mxu0
        %v1439 = vadd.f32 0.0, %v1438
        %1440 = vmatmul.bf16.gmra.mxu0 %v1320
        %v1441 = vpop.f32.mrf.mxu0
        %v1442 = vadd.f32 0.0, %v1441
        %v1443 = vpop.f32.mrf.mxu0
        %v1444 = vadd.f32 0.0, %v1443
        %1445 = vmatmul.bf16.gmra.mxu0 %v1321
        %v1446 = vpop.f32.mrf.mxu0
        %v1447 = vadd.f32 0.0, %v1446
        %v1448 = vpop.f32.mrf.mxu0
        %v1449 = vadd.f32 0.0, %v1448
        %1450 = vmatmul.bf16.gmra.mxu0 %v1322
        %v1451 = vpop.f32.mrf.mxu0
        %v1452 = vadd.f32 0.0, %v1451
        %v1453 = vpop.f32.mrf.mxu0
        %v1454 = vadd.f32 0.0, %v1453
        %1455 = vmatmul.bf16.gmra.mxu0 %v1323
        %v1456 = vpop.f32.mrf.mxu0
        %v1457 = vadd.f32 0.0, %v1456
        %v1458 = vpop.f32.mrf.mxu0
        %v1459 = vadd.f32 0.0, %v1458
        %1460 = vmatmul.bf16.gmra.mxu0 %v1324
        %v1461 = vpop.f32.mrf.mxu0
        %v1462 = vadd.f32 0.0, %v1461
        %v1463 = vpop.f32.mrf.mxu0
        %v1464 = vadd.f32 0.0, %v1463
        %1465 = vmatmul.bf16.gmra.mxu0 %v1325
        %v1466 = vpop.f32.mrf.mxu0
        %v1467 = vadd.f32 0.0, %v1466
        %v1468 = vpop.f32.mrf.mxu0
        %v1469 = vadd.f32 0.0, %v1468
        %1470 = vmatmul.bf16.gmra.mxu0 %v1326
        %v1471 = vpop.f32.mrf.mxu0
        %v1472 = vadd.f32 0.0, %v1471
        %v1473 = vpop.f32.mrf.mxu0
        %v1474 = vadd.f32 0.0, %v1473
        %1475 = vmatmul.bf16.gmra.mxu0 %v1327
        %v1476 = vpop.f32.mrf.mxu0
        %v1477 = vadd.f32 0.0, %v1476
        %v1478 = vpop.f32.mrf.mxu0
        %v1479 = vadd.f32 0.0, %v1478
        %1480 = vmatmul.bf16.gmra.mxu0 %v1328
        %v1481 = vpop.f32.mrf.mxu0
        %v1482 = vadd.f32 0.0, %v1481
        %v1483 = vpop.f32.mrf.mxu0
        %v1484 = vadd.f32 0.0, %v1483
        %1485 = vmatmul.bf16.gmra.mxu0 %v1329
        %v1486 = vpop.f32.mrf.mxu0
        %v1487 = vadd.f32 0.0, %v1486
        %v1488 = vpop.f32.mrf.mxu0
        %v1489 = vadd.f32 0.0, %v1488
        %1490 = vmatmul.bf16.gmra.mxu0 %v1330
        %v1491 = vpop.f32.mrf.mxu0
        %v1492 = vadd.f32 0.0, %v1491
        %v1493 = vpop.f32.mrf.mxu0
        %v1494 = vadd.f32 0.0, %v1493
        %1495 = vmatmul.bf16.gmra.mxu0 %v1331
        %v1496 = vpop.f32.mrf.mxu0
        %v1497 = vadd.f32 0.0, %v1496
        %v1498 = vpop.f32.mrf.mxu0
        %v1499 = vadd.f32 0.0, %v1498
        %1500 = vmatmul.bf16.gmra.mxu0 %v1332
        %v1501 = vpop.f32.mrf.mxu0
        %v1502 = vadd.f32 0.0, %v1501
        %v1503 = vpop.f32.mrf.mxu0
        %v1504 = vadd.f32 0.0, %v1503
        %1505 = vmatmul.bf16.gmra.mxu0 %v1333
        %v1506 = vpop.f32.mrf.mxu0
        %v1507 = vadd.f32 0.0, %v1506
        %v1508 = vpop.f32.mrf.mxu0
        %v1509 = vadd.f32 0.0, %v1508
        %1510 = vmatmul.bf16.gmra.mxu0 %v1334
        %v1511 = vpop.f32.mrf.mxu0
        %v1512 = vadd.f32 0.0, %v1511
        %v1513 = vpop.f32.mrf.mxu0
        %v1514 = vadd.f32 0.0, %v1513
        %1515 = vmatmul.bf16.gmra.mxu0 %v1335
        %v1516 = vpop.f32.mrf.mxu0
        %v1517 = vadd.f32 0.0, %v1516
        %v1518 = vpop.f32.mrf.mxu0
        %v1519 = vadd.f32 0.0, %v1518
        %1520 = vmatmul.bf16.gmra.mxu0 %v1336
        %v1521 = vpop.f32.mrf.mxu0
        %v1522 = vadd.f32 0.0, %v1521
        %v1523 = vpop.f32.mrf.mxu0
        %v1524 = vadd.f32 0.0, %v1523
        %1525 = vmatmul.bf16.gmra.mxu0 %v1337
        %v1526 = vpop.f32.mrf.mxu0
        %v1527 = vadd.f32 0.0, %v1526
        %v1528 = vpop.f32.mrf.mxu0
        %v1529 = vadd.f32 0.0, %v1528
        %1530 = vmatmul.bf16.gmra.mxu0 %v1338
        %v1531 = vpop.f32.mrf.mxu0
        %v1532 = vadd.f32 0.0, %v1531
        %v1533 = vpop.f32.mrf.mxu0
        %v1534 = vadd.f32 0.0, %v1533
        %1535 = vmatmul.bf16.gmra.mxu0 %v1339
        %v1536 = vpop.f32.mrf.mxu0
        %v1537 = vadd.f32 0.0, %v1536
        %v1538 = vpop.f32.mrf.mxu0
        %v1539 = vadd.f32 0.0, %v1538
        %1540 = vmatmul.bf16.gmra.mxu0 %v1340
        %v1541 = vpop.f32.mrf.mxu0
        %v1542 = vadd.f32 0.0, %v1541
        %v1543 = vpop.f32.mrf.mxu0
        %v1544 = vadd.f32 0.0, %v1543
        %1545 = vmatmul.bf16.gmra.mxu0 %v1341
        %v1546 = vpop.f32.mrf.mxu0
        %v1547 = vadd.f32 0.0, %v1546
        %v1548 = vpop.f32.mrf.mxu0
        %v1549 = vadd.f32 0.0, %v1548
        %1550 = vmatmul.bf16.gmra.mxu0 %v1342
        %v1551 = vpop.f32.mrf.mxu0
        %v1552 = vadd.f32 0.0, %v1551
        %v1553 = vpop.f32.mrf.mxu0
        %v1554 = vadd.f32 0.0, %v1553
        %1555 = vmatmul.bf16.gmra.mxu0 %v1343
        %v1556 = vpop.f32.mrf.mxu0
        %v1557 = vadd.f32 0.0, %v1556
        %v1558 = vpop.f32.mrf.mxu0
        %v1559 = vadd.f32 0.0, %v1558
        %1560 = vmatmul.bf16.gmra.mxu0 %v1344
        %v1561 = vpop.f32.mrf.mxu0
        %v1562 = vadd.f32 0.0, %v1561
        %v1563 = vpop.f32.mrf.mxu0
        %v1564 = vadd.f32 0.0, %v1563
        %1565 = vmatmul.bf16.gmra.mxu0 %v1345
        %v1566 = vpop.f32.mrf.mxu0
        %v1567 = vadd.f32 0.0, %v1566
        %v1568 = vpop.f32.mrf.mxu0
        %v1569 = vadd.f32 0.0, %v1568
        %1570 = vmatmul.bf16.gmra.mxu0 %v1346
        %v1571 = vpop.f32.mrf.mxu0
        %v1572 = vadd.f32 0.0, %v1571
        %v1573 = vpop.f32.mrf.mxu0
        %v1574 = vadd.f32 0.0, %v1573
        %1575 = vmatmul.bf16.gmra.mxu0 %v1347
        %v1576 = vpop.f32.mrf.mxu0
        %v1577 = vadd.f32 0.0, %v1576
        %v1578 = vpop.f32.mrf.mxu0
        %v1579 = vadd.f32 0.0, %v1578
        %1580 = vmatmul.bf16.gmra.mxu0 %v1348
        %v1581 = vpop.f32.mrf.mxu0
        %v1582 = vadd.f32 0.0, %v1581
        %v1583 = vpop.f32.mrf.mxu0
        %v1584 = vadd.f32 0.0, %v1583
        %1585 = vmatmul.bf16.gmra.mxu0 %v1349
        %v1586 = vpop.f32.mrf.mxu0
        %v1587 = vadd.f32 0.0, %v1586
        %v1588 = vpop.f32.mrf.mxu0
        %v1589 = vadd.f32 0.0, %v1588
        %1590 = vmatmul.bf16.gmra.mxu0 %v1350
        %v1591 = vpop.f32.mrf.mxu0
        %v1592 = vadd.f32 0.0, %v1591
        %v1593 = vpop.f32.mrf.mxu0
        %v1594 = vadd.f32 0.0, %v1593
        %1595 = vmatmul.bf16.gmra.mxu0 %v1351
        %v1596 = vpop.f32.mrf.mxu0
        %v1597 = vadd.f32 0.0, %v1596
        %v1598 = vpop.f32.mrf.mxu0
        %v1599 = vadd.f32 0.0, %v1598
        %1600 = vmatmul.bf16.gmra.mxu0 %v1352
        %v1601 = vpop.f32.mrf.mxu0
        %v1602 = vadd.f32 0.0, %v1601
        %v1603 = vpop.f32.mrf.mxu0
        %v1604 = vadd.f32 0.0, %v1603
        %1605 = vmatmul.bf16.gmra.mxu0 %v1353
        %v1606 = vpop.f32.mrf.mxu0
        %v1607 = vadd.f32 0.0, %v1606
        %v1608 = vpop.f32.mrf.mxu0
        %v1609 = vadd.f32 0.0, %v1608
        %1610 = vmatmul.bf16.gmra.mxu0 %v1354
        %v1611 = vpop.f32.mrf.mxu0
        %v1612 = vadd.f32 0.0, %v1611
        %v1613 = vpop.f32.mrf.mxu0
        %v1614 = vadd.f32 0.0, %v1613
        %1615 = vmatmul.bf16.gmra.mxu0 %v1355
        %v1616 = vpop.f32.mrf.mxu0
        %v1617 = vadd.f32 0.0, %v1616
        %v1618 = vpop.f32.mrf.mxu0
        %v1619 = vadd.f32 0.0, %v1618
        %1620 = vmatmul.bf16.gmra.mxu0 %v1356
        %v1621 = vpop.f32.mrf.mxu0
        %v1622 = vadd.f32 0.0, %v1621
        %v1623 = vpop.f32.mrf.mxu0
        %v1624 = vadd.f32 0.0, %v1623
        %1625 = vmatmul.bf16.gmra.mxu0 %v1357
        %v1626 = vpop.f32.mrf.mxu0
        %v1627 = vadd.f32 0.0, %v1626
        %v1628 = vpop.f32.mrf.mxu0
        %v1629 = vadd.f32 0.0, %v1628
        %1630 = vdwg.mxu0
        %v1631 = vmul.f32 %v1432, %v1432
        %v1632 = vmul.f32 %v1434, %v1434
        %v1633 = vmul.f32 %v1437, %v1437
        %v1634 = vmul.f32 %v1439, %v1439
        %v1635 = vmul.f32 %v1442, %v1442
        %v1636 = vmul.f32 %v1444, %v1444
        %v1637 = vmul.f32 %v1447, %v1447
        %v1638 = vmul.f32 %v1449, %v1449
        %v1639 = vmul.f32 %v1452, %v1452
        %v1640 = vmul.f32 %v1454, %v1454
        %v1641 = vmul.f32 %v1457, %v1457
        %v1642 = vmul.f32 %v1459, %v1459
        %v1643 = vmul.f32 %v1462, %v1462
        %v1644 = vmul.f32 %v1464, %v1464
        %v1645 = vmul.f32 %v1467, %v1467
        %v1646 = vmul.f32 %v1469, %v1469
        %v1647 = vmul.f32 %v1472, %v1472
        %v1648 = vmul.f32 %v1474, %v1474
        %v1649 = vmul.f32 %v1477, %v1477
        %v1650 = vmul.f32 %v1479, %v1479
        %v1651 = vmul.f32 %v1482, %v1482
        %v1652 = vmul.f32 %v1484, %v1484
        %v1653 = vmul.f32 %v1487, %v1487
        %v1654 = vmul.f32 %v1489, %v1489
        %v1655 = vmul.f32 %v1492, %v1492
        %v1656 = vmul.f32 %v1494, %v1494
        %v1657 = vmul.f32 %v1497, %v1497
        %v1658 = vmul.f32 %v1499, %v1499
        %v1659 = vmul.f32 %v1502, %v1502
        %v1660 = vmul.f32 %v1504, %v1504
        %v1661 = vmul.f32 %v1507, %v1507
        %v1662 = vmul.f32 %v1509, %v1509
        %v1663 = vmul.f32 %v1432, %v1472
        %v1664 = vmul.f32 %v1434, %v1474
        %v1665 = vmul.f32 %v1437, %v1477
        %v1666 = vmul.f32 %v1439, %v1479
        %v1667 = vmul.f32 %v1442, %v1482
        %v1668 = vmul.f32 %v1444, %v1484
        %v1669 = vmul.f32 %v1447, %v1487
        %v1670 = vmul.f32 %v1449, %v1489
        %v1671 = vmul.f32 %v1452, %v1492
        %v1672 = vmul.f32 %v1454, %v1494
        %v1673 = vmul.f32 %v1457, %v1497
        %v1674 = vmul.f32 %v1459, %v1499
        %v1675 = vmul.f32 %v1462, %v1502
        %v1676 = vmul.f32 %v1464, %v1504
        %v1677 = vmul.f32 %v1467, %v1507
        %v1678 = vmul.f32 %v1469, %v1509
        %v1679 = vsub.f32 %v1512, %v1631
        %v1680 = vsub.f32 %v1514, %v1632
        %v1681 = vsub.f32 %v1517, %v1633
        %v1682 = vsub.f32 %v1519, %v1634
        %v1683 = vsub.f32 %v1522, %v1635
        %v1684 = vsub.f32 %v1524, %v1636
        %v1685 = vsub.f32 %v1527, %v1637
        %v1686 = vsub.f32 %v1529, %v1638
        %v1687 = vsub.f32 %v1532, %v1639
        %v1688 = vsub.f32 %v1534, %v1640
        %v1689 = vsub.f32 %v1537, %v1641
        %v1690 = vsub.f32 %v1539, %v1642
        %v1691 = vsub.f32 %v1542, %v1643
        %v1692 = vsub.f32 %v1544, %v1644
        %v1693 = vsub.f32 %v1547, %v1645
        %v1694 = vsub.f32 %v1549, %v1646
        %v1695 = vsub.f32 %v1552, %v1647
        %v1696 = vsub.f32 %v1554, %v1648
        %v1697 = vsub.f32 %v1557, %v1649
        %v1698 = vsub.f32 %v1559, %v1650
        %v1699 = vsub.f32 %v1562, %v1651
        %v1700 = vsub.f32 %v1564, %v1652
        %v1701 = vsub.f32 %v1567, %v1653
        %v1702 = vsub.f32 %v1569, %v1654
        %v1703 = vsub.f32 %v1572, %v1655
        %v1704 = vsub.f32 %v1574, %v1656
        %v1705 = vsub.f32 %v1577, %v1657
        %v1706 = vsub.f32 %v1579, %v1658
        %v1707 = vsub.f32 %v1582, %v1659
        %v1708 = vsub.f32 %v1584, %v1660
        %v1709 = vsub.f32 %v1587, %v1661
        %v1710 = vsub.f32 %v1589, %v1662
        %v1711 = vsub.f32 %v1592, %v1663
        %v1712 = vsub.f32 %v1594, %v1664
        %v1713 = vsub.f32 %v1597, %v1665
        %v1714 = vsub.f32 %v1599, %v1666
        %v1715 = vsub.f32 %v1602, %v1667
        %v1716 = vsub.f32 %v1604, %v1668
        %v1717 = vsub.f32 %v1607, %v1669
        %v1718 = vsub.f32 %v1609, %v1670
        %v1719 = vsub.f32 %v1612, %v1671
        %v1720 = vsub.f32 %v1614, %v1672
        %v1721 = vsub.f32 %v1617, %v1673
        %v1722 = vsub.f32 %v1619, %v1674
        %v1723 = vsub.f32 %v1622, %v1675
        %v1724 = vsub.f32 %v1624, %v1676
        %v1725 = vsub.f32 %v1627, %v1677
        %v1726 = vsub.f32 %v1629, %v1678
        %v1727 = vmul.f32 %v1663, 2.0
        %v1728 = vmul.f32 %v1664, 2.0
        %v1729 = vmul.f32 %v1665, 2.0
        %v1730 = vmul.f32 %v1666, 2.0
        %v1731 = vmul.f32 %v1667, 2.0
        %v1732 = vmul.f32 %v1668, 2.0
        %v1733 = vmul.f32 %v1669, 2.0
        %v1734 = vmul.f32 %v1670, 2.0
        %v1735 = vmul.f32 %v1671, 2.0
        %v1736 = vmul.f32 %v1672, 2.0
        %v1737 = vmul.f32 %v1673, 2.0
        %v1738 = vmul.f32 %v1674, 2.0
        %v1739 = vmul.f32 %v1675, 2.0
        %v1740 = vmul.f32 %v1676, 2.0
        %v1741 = vmul.f32 %v1677, 2.0
        %v1742 = vmul.f32 %v1678, 2.0
        %v1743 = vadd.f32 %v1727, 0.0001
        %v1744 = vadd.f32 %v1728, 0.0001
        %v1745 = vadd.f32 %v1729, 0.0001
        %v1746 = vadd.f32 %v1730, 0.0001
        %v1747 = vadd.f32 %v1731, 0.0001
        %v1748 = vadd.f32 %v1732, 0.0001
        %v1749 = vadd.f32 %v1733, 0.0001
        %v1750 = vadd.f32 %v1734, 0.0001
        %v1751 = vadd.f32 %v1735, 0.0001
        %v1752 = vadd.f32 %v1736, 0.0001
        %v1753 = vadd.f32 %v1737, 0.0001
        %v1754 = vadd.f32 %v1738, 0.0001
        %v1755 = vadd.f32 %v1739, 0.0001
        %v1756 = vadd.f32 %v1740, 0.0001
        %v1757 = vadd.f32 %v1741, 0.0001
        %v1758 = vadd.f32 %v1742, 0.0001
        %v1759 = vmul.f32 %v1711, 2.0
        %v1760 = vmul.f32 %v1712, 2.0
        %v1761 = vmul.f32 %v1713, 2.0
        %v1762 = vmul.f32 %v1714, 2.0
        %v1763 = vmul.f32 %v1715, 2.0
        %v1764 = vmul.f32 %v1716, 2.0
        %v1765 = vmul.f32 %v1717, 2.0
        %v1766 = vmul.f32 %v1718, 2.0
        %v1767 = vmul.f32 %v1719, 2.0
        %v1768 = vmul.f32 %v1720, 2.0
        %v1769 = vmul.f32 %v1721, 2.0
        %v1770 = vmul.f32 %v1722, 2.0
        %v1771 = vmul.f32 %v1723, 2.0
        %v1772 = vmul.f32 %v1724, 2.0
        %v1773 = vmul.f32 %v1725, 2.0
        %v1774 = vmul.f32 %v1726, 2.0
        %v1775 = vadd.f32 %v1759, 0.0009
        %v1776 = vadd.f32 %v1760, 0.0009
        %v1777 = vadd.f32 %v1761, 0.0009
        %v1778 = vadd.f32 %v1762, 0.0009
        %v1779 = vadd.f32 %v1763, 0.0009
        %v1780 = vadd.f32 %v1764, 0.0009
        %v1781 = vadd.f32 %v1765, 0.0009
        %v1782 = vadd.f32 %v1766, 0.0009
        %v1783 = vadd.f32 %v1767, 0.0009
        %v1784 = vadd.f32 %v1768, 0.0009
        %v1785 = vadd.f32 %v1769, 0.0009
        %v1786 = vadd.f32 %v1770, 0.0009
        %v1787 = vadd.f32 %v1771, 0.0009
        %v1788 = vadd.f32 %v1772, 0.0009
        %v1789 = vadd.f32 %v1773, 0.0009
        %v1790 = vadd.f32 %v1774, 0.0009
        %v1791 = vmul.f32 %v1743, %v1775
        %v1792 = vmul.f32 %v1744, %v1776
        %v1793 = vmul.f32 %v1745, %v1777
        %v1794 = vmul.f32 %v1746, %v1778
        %v1795 = vmul.f32 %v1747, %v1779
        %v1796 = vmul.f32 %v1748, %v1780
        %v1797 = vmul.f32 %v1749, %v1781
        %v1798 = vmul.f32 %v1750, %v1782
        %v1799 = vmul.f32 %v1751, %v1783
        %v1800 = vmul.f32 %v1752, %v1784
        %v1801 = vmul.f32 %v1753, %v1785
        %v1802 = vmul.f32 %v1754, %v1786
        %v1803 = vmul.f32 %v1755, %v1787
        %v1804 = vmul.f32 %v1756, %v1788
        %v1805 = vmul.f32 %v1757, %v1789
        %v1806 = vmul.f32 %v1758, %v1790
        %v1807 = vadd.f32 %v1631, %v1647
        %v1808 = vadd.f32 %v1632, %v1648
        %v1809 = vadd.f32 %v1633, %v1649
        %v1810 = vadd.f32 %v1634, %v1650
        %v1811 = vadd.f32 %v1635, %v1651
        %v1812 = vadd.f32 %v1636, %v1652
        %v1813 = vadd.f32 %v1637, %v1653
        %v1814 = vadd.f32 %v1638, %v1654
        %v1815 = vadd.f32 %v1639, %v1655
        %v1816 = vadd.f32 %v1640, %v1656
        %v1817 = vadd.f32 %v1641, %v1657
        %v1818 = vadd.f32 %v1642, %v1658
        %v1819 = vadd.f32 %v1643, %v1659
        %v1820 = vadd.f32 %v1644, %v1660
        %v1821 = vadd.f32 %v1645, %v1661
        %v1822 = vadd.f32 %v1646, %v1662
        %v1823 = vadd.f32 %v1807, 0.0001
        %v1824 = vadd.f32 %v1808, 0.0001
        %v1825 = vadd.f32 %v1809, 0.0001
        %v1826 = vadd.f32 %v1810, 0.0001
        %v1827 = vadd.f32 %v1811, 0.0001
        %v1828 = vadd.f32 %v1812, 0.0001
        %v1829 = vadd.f32 %v1813, 0.0001
        %v1830 = vadd.f32 %v1814, 0.0001
        %v1831 = vadd.f32 %v1815, 0.0001
        %v1832 = vadd.f32 %v1816, 0.0001
        %v1833 = vadd.f32 %v1817, 0.0001
        %v1834 = vadd.f32 %v1818, 0.0001
        %v1835 = vadd.f32 %v1819, 0.0001
        %v1836 = vadd.f32 %v1820, 0.0001
        %v1837 = vadd.f32 %v1821, 0.0001
        %v1838 = vadd.f32 %v1822, 0.0001
        %v1839 = vadd.f32 %v1679, %v1695
        %v1840 = vadd.f32 %v1680, %v1696
        %v1841 = vadd.f32 %v1681, %v1697
        %v1842 = vadd.f32 %v1682, %v1698
        %v1843 = vadd.f32 %v1683, %v1699
        %v1844 = vadd.f32 %v1684, %v1700
        %v1845 = vadd.f32 %v1685, %v1701
        %v1846 = vadd.f32 %v1686, %v1702
        %v1847 = vadd.f32 %v1687, %v1703
        %v1848 = vadd.f32 %v1688, %v1704
        %v1849 = vadd.f32 %v1689, %v1705
        %v1850 = vadd.f32 %v1690, %v1706
        %v1851 = vadd.f32 %v1691, %v1707
        %v1852 = vadd.f32 %v1692, %v1708
        %v1853 = vadd.f32 %v1693, %v1709
        %v1854 = vadd.f32 %v1694, %v1710
        %v1855 = vadd.f32 %v1839, 0.0009
        %v1856 = vadd.f32 %v1840, 0.0009
        %v1857 = vadd.f32 %v1841, 0.0009
        %v1858 = vadd.f32 %v1842, 0.0009
        %v1859 = vadd.f32 %v1843, 0.0009
        %v1860 = vadd.f32 %v1844, 0.0009
        %v1861 = vadd.f32 %v1845, 0.0009
        %v1862 = vadd.f32 %v1846, 0.0009
        %v1863 = vadd.f32 %v1847, 0.0009
        %v1864 = vadd.f32 %v1848, 0.0009
        %v1865 = vadd.f32 %v1849, 0.0009
        %v1866 = vadd.f32 %v1850, 0.0009
        %v1867 = vadd.f32 %v1851, 0.0009
        %v1868 = vadd.f32 %v1852, 0.0009
        %v1869 = vadd.f32 %v1853, 0.0009
        %v1870 = vadd.f32 %v1854, 0.0009
        %v1871 = vmul.f32 %v1823, %v1855
        %v1872 = vmul.f32 %v1824, %v1856
        %v1873 = vmul.f32 %v1825, %v1857
        %v1874 = vmul.f32 %v1826, %v1858
        %v1875 = vmul.f32 %v1827, %v1859
        %v1876 = vmul.f32 %v1828, %v1860
        %v1877 = vmul.f32 %v1829, %v1861
        %v1878 = vmul.f32 %v1830, %v1862
        %v1879 = vmul.f32 %v1831, %v1863
        %v1880 = vmul.f32 %v1832, %v1864
        %v1881 = vmul.f32 %v1833, %v1865
        %v1882 = vmul.f32 %v1834, %v1866
        %v1883 = vmul.f32 %v1835, %v1867
        %v1884 = vmul.f32 %v1836, %v1868
        %v1885 = vmul.f32 %v1837, %v1869
        %v1886 = vmul.f32 %v1838, %v1870
        %v1887 = vrcp.pop %v1871
        %v1888 = vrcp.pop %v1872
        %v1889 = vrcp.pop %v1873
        %v1890 = vrcp.pop %v1874
        %v1891 = vrcp.pop %v1875
        %v1892 = vrcp.pop %v1876
        %v1893 = vrcp.pop %v1877
        %v1894 = vrcp.pop %v1878
        %v1895 = vrcp.pop %v1879
        %v1896 = vrcp.pop %v1880
        %v1897 = vrcp.pop %v1881
        %v1898 = vrcp.pop %v1882
        %v1899 = vrcp.pop %v1883
        %v1900 = vrcp.pop %v1884
        %v1901 = vrcp.pop %v1885
        %v1902 = vrcp.pop %v1886
        %v1903 = vmul.f32 %v1791, %v1887
        %v1904 = vmul.f32 %v1792, %v1888
        %v1905 = vmul.f32 %v1793, %v1889
        %v1906 = vmul.f32 %v1794, %v1890
        %v1907 = vmul.f32 %v1795, %v1891
        %v1908 = vmul.f32 %v1796, %v1892
        %v1909 = vmul.f32 %v1797, %v1893
        %v1910 = vmul.f32 %v1798, %v1894
        %v1911 = vmul.f32 %v1799, %v1895
        %v1912 = vmul.f32 %v1800, %v1896
        %v1913 = vmul.f32 %v1801, %v1897
        %v1914 = vmul.f32 %v1802, %v1898
        %v1915 = vmul.f32 %v1803, %v1899
        %v1916 = vmul.f32 %v1804, %v1900
        %v1917 = vmul.f32 %v1805, %v1901
        %v1918 = vmul.f32 %v1806, %v1902
        %v1919 = vadd.f32 %v1903, %v1904
        %v1920 = vadd.f32 %v1919, %v1905
        %v1921 = vadd.f32 %v1920, %v1906
        %v1922 = vadd.f32 %v1921, %v1907
        %v1923 = vadd.f32 %v1922, %v1908
        %v1924 = vadd.f32 %v1923, %v1909
        %v1925 = vadd.f32 %v1924, %v1910
        %v1926 = vadd.f32 %v1925, %v1911
        %v1927 = vadd.f32 %v1926, %v1912
        %v1928 = vadd.f32 %v1927, %v1913
        %v1929 = vadd.f32 %v1928, %v1914
        %v1930 = vadd.f32 %v1929, %v1915
        %v1931 = vadd.f32 %v1930, %v1916
        %v1932 = vadd.f32 %v1931, %v1917
        %v1933 = vadd.f32 %v1932, %v1918
        %1934 = vadd.xlane.f32.xlu0 %v1933
        %v1935 = vpop.xlane.xlu0 %1934
        %v1936 = vrot.slane %v1935, 4
        %v1937 = vadd.f32 %v1935, %v1936
        %v1938 = vrot.slane %v1937, 2
        %v1939 = vadd.f32 %v1937, %v1938
        %v1940 = vrot.slane %v1939, 1
        %v1941 = vadd.f32 %v1939, %v1940
        %s1942 = vtos %v1941
        %v1943 = vadd.f32 %v409, %v410
        %v1944 = vadd.f32 %v1943, %v411
        %v1945 = vadd.f32 %v1944, %v412
        %v1946 = vadd.f32 %v1945, %v413
        %v1947 = vadd.f32 %v1946, %v414
        %v1948 = vadd.f32 %v1947, %v415
        %v1949 = vadd.f32 %v1948, %v416
        %v1950 = vadd.f32 %v1949, %v417
        %v1951 = vadd.f32 %v1950, %v418
        %v1952 = vadd.f32 %v1951, %v419
        %v1953 = vadd.f32 %v1952, %v420
        %v1954 = vadd.f32 %v1953, %v421
        %v1955 = vadd.f32 %v1954, %v422
        %v1956 = vadd.f32 %v1955, %v423
        %v1957 = vadd.f32 %v1956, %v424
        %1958 = vadd.xlane.f32.xlu0 %v1957
        %v1959 = vpop.xlane.xlu0 %1958
        %v1960 = vrot.slane %v1959, 4
        %v1961 = vadd.f32 %v1959, %v1960
        %v1962 = vrot.slane %v1961, 2
        %v1963 = vadd.f32 %v1961, %v1962
        %v1964 = vrot.slane %v1963, 1
        %v1965 = vadd.f32 %v1963, %v1964
        %s1966 = vtos %v1965
        %v1967 = vlaneseq
        %v1968 = vand.u32 %v1967, 127
        %vm1969 = vcmp.eq.s32.totalorder %v1968, 0
        %v1970 = vstv %s640
        %v1971 = vsel %vm1969, %v1970, 0.0
        %v1972 = vadd.f32 %v1971, 0.0
        %vm1973 = vcmp.eq.s32.totalorder %v1968, 2
        %v1974 = vstv %s1966
        %v1975 = vsel %vm1973, %v1974, 0.0
        %v1976 = vadd.f32 %v1972, %v1975
        %vm1977 = vcmp.eq.s32.totalorder %v1968, 3
        %v1978 = vstv %s1942
        %v1979 = vsel %vm1977, %v1978, 0.0
        %v1980 = vadd.f32 %v1976, %v1979
        %1981 = vst [vmem:[%s408] sm:$0x1] %v1980
        %s1982 = sand.u32 %s155, 1
        %s1983 = scalar_lea.sflag [#allocation4], %s1982
        %s1984 = sand.u32 %s155, 1
        %s1985 = smul.addr %s1984, 128
        %s1986 = scalar_lea.vmem [#allocation11], %s1985
        %s1987 = sand.u32 %s181, 1
        %s1988 = scalar_lea.sflag [#allocation13], %s1987
        %s1989 = sand.u32 %s181, 1
        %s1990 = smul.addr %s1989, 128
        %s1991 = scalar_lea.vmem [#allocation12], %s1990
        %p1992 = scmp.lt.s32.totalorder %s32, 2
        %s1993 = scalar_select %p1992, %s32, 2
        %s1994 = scalar_lea.vmem %s7, %s1993
        // Predicated region
        $region61: #{hand_object_loss_forward.1} parent=39 // pred_check
          %p1995 = pneg %p165
        $region62: #{hand_object_loss_forward.1} parent=39 // pred_check_branch
          %1997 = sbr.rel (%p1995) target = $region64
        $region63: #{hand_object_loss_forward.1} parent=39 // pred_region
          %1999 = vsyncadd %s1983, 0
          %s2000 = smul.addr %s32, 16
          %s2001 = smul.addr %s2000, 8
          %s2002 = scalar_lea.hbm %s5, %s2001
          %s2003 = sshll.u32 %s1986, 4
          %s2004 = int_to_ptr.vmem [resolvable:$true] %s2003
          %s2005 = sshll.u32 %s2002, 4
          %s2006 = int_to_ptr.hbm [resolvable:$true] %s2005
          %2011 = dma.vmem_to_hbm [thread:$0]  %s2004, 2048, %s2006, %s1983, 128, 128, 8
        $region64: #{hand_object_loss_forward.1} parent=39 // pred_fallthru
          _
        // Predicated region
        $region65: #{hand_object_loss_forward.1} parent=39 // pred_check
          %p2012 = pneg %p191
        $region66: #{hand_object_loss_forward.1} parent=39 // pred_check_branch
          %2014 = sbr.rel (%p2012) target = $region68
        $region67: #{hand_object_loss_forward.1} parent=39 // pred_region
          %2016 = vsyncadd %s1988, 0
          %s2017 = smul.addr %s32, 16
          %s2018 = smul.addr %s2017, 8
          %s2019 = scalar_lea.hbm %s6, %s2018
          %s2020 = sshll.u32 %s1991, 4
          %s2021 = int_to_ptr.vmem [resolvable:$true] %s2020
          %s2022 = sshll.u32 %s2019, 4
          %s2023 = int_to_ptr.hbm [resolvable:$true] %s2022
          %2028 = dma.vmem_to_hbm [thread:$0]  %s2021, 2048, %s2023, %s1988, 128, 128, 8
        $region68: #{hand_object_loss_forward.1} parent=39 // pred_fallthru
          _
        // Predicated region
        $region69: #{hand_object_loss_forward.1} parent=39 // pred_check
          %p2029 = pneg %p217
        $region70: #{hand_object_loss_forward.1} parent=39 // pred_check_branch
          %2031 = sbr.rel (%p2029) target = $region72
        $region71: #{hand_object_loss_forward.1} parent=39 // pred_region
          _
        $region72: #{hand_object_loss_forward.1} parent=39 // pred_fallthru
          _
      $region40: #{hand_object_loss_forward.1} parent=5 // pred_fallthru
        _
      %p2032 = scmp.le.s32.totalorder 2, %s27
      // Predicated region
      $region73: #{hand_object_loss_forward.1} parent=5 // pred_check
        %p2033 = pneg %p2032
      $region74: #{hand_object_loss_forward.1} parent=5 // pred_check_branch
        %2035 = sbr.rel (%p2033) target = $region76
      $region75: #{hand_object_loss_forward.1} parent=5 // pred_region
        %s2036 = ssub.s32 %s27, 2
        // Predicated region
        $region77: #{hand_object_loss_forward.1} parent=75 // pred_check
          %p2037 = pneg %p171
        $region78: #{hand_object_loss_forward.1} parent=75 // pred_check_branch
          %2039 = sbr.rel (%p2037) target = $region80
        $region79: #{hand_object_loss_forward.1} parent=75 // pred_region
          %s2040 = sand.u32 %s156, 1
          %s2041 = scalar_lea.sflag [#allocation4], %s2040
          %s2042 = sand.u32 %s156, 1
          %s2043 = smul.addr %s2042, 128
          %s2044 = scalar_lea.vmem [#allocation11], %s2043
          %2046 = dma.done %s2041, 2048
        $region80: #{hand_object_loss_forward.1} parent=75 // pred_fallthru
          _
        // Predicated region
        $region81: #{hand_object_loss_forward.1} parent=75 // pred_check
          %p2047 = pneg %p197
        $region82: #{hand_object_loss_forward.1} parent=75 // pred_check_branch
          %2049 = sbr.rel (%p2047) target = $region84
        $region83: #{hand_object_loss_forward.1} parent=75 // pred_region
          %s2050 = sand.u32 %s182, 1
          %s2051 = scalar_lea.sflag [#allocation13], %s2050
          %s2052 = sand.u32 %s182, 1
          %s2053 = smul.addr %s2052, 128
          %s2054 = scalar_lea.vmem [#allocation12], %s2053
          %2056 = dma.done %s2051, 2048
        $region84: #{hand_object_loss_forward.1} parent=75 // pred_fallthru
          _
        // Predicated region
        $region85: #{hand_object_loss_forward.1} parent=75 // pred_check
          %p2057 = pneg %p223
        $region86: #{hand_object_loss_forward.1} parent=75 // pred_check_branch
          %2059 = sbr.rel (%p2057) target = $region88
        $region87: #{hand_object_loss_forward.1} parent=75 // pred_region
          %p2060 = scmp.lt.s32.totalorder %s33, 2
          %s2061 = scalar_select %p2060, %s33, 2
          %s2062 = scalar_lea.vmem %s7, %s2061
        $region88: #{hand_object_loss_forward.1} parent=75 // pred_fallthru
          _
      $region76: #{hand_object_loss_forward.1} parent=5 // pred_fallthru
        _
    $region6: #{hand_object_loss_forward.1} parent=1 // loop_footer
      %s31 = sadd.s32 1, %s27
    $region7: #{hand_object_loss_forward.1} parent=1 // loop_footer_branch
      %26 = sbr.rel target = $region3
    $region8: #{hand_object_loss_forward.1} parent=1 // loop_exit
      _
    %2063 = vsyncpa [#allocation3], 1
    %s2064 = scalar_lea.sflag [#allocation3], 1
    %2065 = vsyncpa %s2064, 1
    %2066 = vsyncpa [#allocation6], 1
    %s2067 = scalar_lea.sflag [#allocation6], 1
    %2068 = vsyncpa %s2067, 1
    %2069 = vsyncpa [#allocation9], 1
    %2070 = vsyncpa [#allocation4], 1
    %s2071 = scalar_lea.sflag [#allocation4], 1
    %2072 = vsyncpa %s2071, 1
    %2073 = vsyncpa [#allocation13], 1
    %s2074 = scalar_lea.sflag [#allocation13], 1
    %2075 = vsyncpa %s2074, 1

</llo_original>
